<compile_context>
chip_gen: v7x
topology: tpu7x:2x2x1
jax: 0.10.0
libtpu: 0.0.40
codegen_flags: <defaults>
</compile_context>

<pallas_src>
import functools
import math

import jax
import jax.numpy as jnp
from jax import lax
from jax.experimental import pallas as pl
from jax.experimental.pallas import tpu as pltpu


def _pick_vmem_limit():
    """Generation-aware scoped-VMEM limit: ~96 MiB on v5e/v6e (128 MiB
    physical), ~48 MiB on v7x (64 MiB physical)."""
    try:
        cap = pltpu.get_tpu_info().vmem_capacity_bytes
    except Exception:
        cap = 64 * 1024 * 1024
    return 96 * 1024 * 1024 if cap >= 128 * 1024 * 1024 else 48 * 1024 * 1024


_VMEM_LIMIT = _pick_vmem_limit()


# ----------------------------------------------------------------------------
# Momentum (EMA) update of the key-encoder parameters
# ----------------------------------------------------------------------------

def _ema_kernel(q_ref, k_ref, o_ref, *, m):
    o_ref[...] = k_ref[...] * m + q_ref[...] * (1.0 - m)


def momentum_update(param_q, param_k, m):
    """k <- k*m + q*(1-m), updated in place via input_output_aliases.
    Large params are flattened to lane-dense (rows, 1024) tiles; tiny params
    use a single full-array block."""
    shape, dtype = param_k.shape, param_k.dtype
    n = param_k.size
    kern = functools.partial(_ema_kernel, m=float(m))
    cols = 1024                                    # 8 sublanes x 128 lanes
    rows = n // cols
    if n % cols == 0 and rows % 8 == 0 and rows >= 16:
        tr = math.gcd(rows, 512)                   # divides rows, multiple of 8
        out = pl.pallas_call(
            kern,
            grid=(rows // tr,),
            in_specs=[pl.BlockSpec((tr, cols), lambda i: (i, 0)),
                      pl.BlockSpec((tr, cols), lambda i: (i, 0))],
            out_specs=pl.BlockSpec((tr, cols), lambda i: (i, 0)),
            out_shape=jax.ShapeDtypeStruct((rows, cols), dtype),
            input_output_aliases={1: 0},
            compiler_params=pltpu.CompilerParams(
                dimension_semantics=("parallel",),
                vmem_limit_bytes=_VMEM_LIMIT),
        )(param_q.reshape(rows, cols), param_k.reshape(rows, cols))
        return out.reshape(shape)
    return pl.pallas_call(
        kern,
        out_shape=jax.ShapeDtypeStruct(shape, dtype),
        input_output_aliases={1: 0},
    )(param_q, param_k)


# ----------------------------------------------------------------------------
# Fused encoder: pool+conv (MXU) + spatial mean + grid_sample + interpolate
# ----------------------------------------------------------------------------

def _encoder_fused_kernel(w_ref, r_ref, x_ref, wb_ref, px_ref, pf_ref, itp_ref):
    # One image per grid step.  All matmul operands arrive as bf16 (cast in the
    # wrapper before the DMA); accumulation is f32.  fx stays VMEM-resident.
    fx = jnp.dot(w_ref[...], x_ref[0],
                 preferred_element_type=jnp.float32)              # (D, HW)
    # fused spatial-mean epilogue (== torch.mean(fx, dim=(2, 3)))
    px_ref[0] = jnp.mean(fx, axis=-1, keepdims=True)
    fxb = fx.astype(jnp.bfloat16)                                 # VMEM recast only
    # grid_sample: contract HW (last dims of both operands) -> no transpose,
    # lane-padded (D, NP_pad) output is an unmasked store.
    pf_ref[0] = lax.dot_general(
        fxb, wb_ref[0],
        dimension_numbers=(((1,), (1,)), ((), ())),
        preferred_element_type=jnp.float32)                       # (D, NP_pad)
    # bilinear F.interpolate to (S, S): lane-dense S*S-wide output.
    itp_ref[0] = jnp.dot(fxb, r_ref[...],
                         preferred_element_type=jnp.float32)      # (D, S*S)


def encoder_fused(x, w, wb_bf16, r_bf16):
    """Stand-in backbone (2x2 avg-pool + 1x1 conv) fused with every consumer
    of fx: spatial mean (fx_moco), grid_sample (pixel_feat) and bilinear
    interpolation (fx_2 / fx_2_f flat features).  fx never leaves VMEM.
    Returns (px (B,D), pixel_feat_padded (B,D,NP_pad), interp (B,D,S*S))."""
    # TODO(synk): ResNetPLRC is an external backbone not provided; stand-in only.
    B, Cin, H, W = x.shape
    Hf, Wf = H // 2, W // 2
    HW = Hf * Wf
    D = w.shape[1]
    K = Cin * 4
    NP_pad = wb_bf16.shape[1]
    SS = r_bf16.shape[1]
    # fold the 2x2 pooling taps into the contraction axis (K = Cin*4)
    xp = x.reshape(B, Cin, Hf, 2, Wf, 2).transpose(0, 1, 3, 5, 2, 4)
    xp = xp.reshape(B, K, HW).astype(jnp.bfloat16)
    w_eff = (jnp.repeat(w.T, 4, axis=1) * 0.25).astype(jnp.bfloat16)   # (D, K)
    px3, pf_pad, itp = pl.pallas_call(
        _encoder_fused_kernel,
        grid=(B,),
        in_specs=[pl.BlockSpec((D, K), lambda b: (0, 0)),         # shared conv weight
                  pl.BlockSpec((HW, SS), lambda b: (0, 0)),       # shared resize matrix
                  pl.BlockSpec((1, K, HW), lambda b: (b, 0, 0)),
                  pl.BlockSpec((1, NP_pad, HW), lambda b: (b, 0, 0))],
        out_specs=(pl.BlockSpec((1, D, 1), lambda b: (b, 0, 0)),
                   pl.BlockSpec((1, D, NP_pad), lambda b: (b, 0, 0)),
                   pl.BlockSpec((1, D, SS), lambda b: (b, 0, 0))),
        out_shape=(jax.ShapeDtypeStruct((B, D, 1), jnp.float32),
                   jax.ShapeDtypeStruct((B, D, NP_pad), jnp.float32),
                   jax.ShapeDtypeStruct((B, D, SS), jnp.float32)),
        compiler_params=pltpu.CompilerParams(
            dimension_semantics=("parallel",),
            vmem_limit_bytes=_VMEM_LIMIT),
    )(w_eff, r_bf16, xp, wb_bf16)
    return px3[:, :, 0], pf_pad, itp


# ----------------------------------------------------------------------------
# Fused normalize + cosine-sim + first-occurrence argmax
# ----------------------------------------------------------------------------

def _match_kernel(top_ref, q_ref, idx_ref):
    top = top_ref[0]                                              # (P, C) f32
    q = q_ref[0]                                                  # (P, C) f32
    topn = top * lax.rsqrt(
        jnp.maximum(jnp.sum(top * top, axis=-1, keepdims=True), 1e-24))
    qn = q * lax.rsqrt(
        jnp.maximum(jnp.sum(q * q, axis=-1, keepdims=True), 1e-24))
    # sims_t[j, i] = <qn_j, topn_i>; reducing over rows (sublanes) makes the
    # argmax result a lane vector -> lane-dense store of the indices.
    sims_t = lax.dot_general(
        qn.astype(jnp.bfloat16), topn.astype(jnp.bfloat16),
        dimension_numbers=(((1,), (1,)), ((), ())),
        preferred_element_type=jnp.float32)                       # (P_q, P_top)
    maxv = jnp.max(sims_t, axis=0, keepdims=True)                 # (1, P_top)
    row = lax.broadcasted_iota(jnp.int32, sims_t.shape, 0).astype(jnp.float32)
    cand = jnp.where(sims_t >= maxv, row, float(sims_t.shape[0]))
    idx_ref[0] = jnp.min(cand, axis=0, keepdims=True).astype(jnp.int32)


def pixel_match_indices(top, qarch):
    """top, qarch: (B, P, C) f32 -> (B, P) int32 first-max indices (torch.max)."""
    B, P, C = top.shape
    idx = pl.pallas_call(
        _match_kernel,
        grid=(B,),
        in_specs=[pl.BlockSpec((1, P, C), lambda b: (b, 0, 0)),
                  pl.BlockSpec((1, P, C), lambda b: (b, 0, 0))],
        out_specs=pl.BlockSpec((1, 1, P), lambda b: (b, 0, 0)),
        out_shape=jax.ShapeDtypeStruct((B, 1, P), jnp.int32),
        compiler_params=pltpu.CompilerParams(
            dimension_semantics=("parallel",),
            vmem_limit_bytes=_VMEM_LIMIT),
    )(top, qarch)
    return idx[:, 0, :]


# ----------------------------------------------------------------------------
# Linear-operator builders for grid_sample / interpolate (plain JAX, jit-fused)
# ----------------------------------------------------------------------------

def _grid_sample_weights(grids_norm, Hf, Wf, np_pad):
    """Bilinear sampling weights of F.grid_sample (bilinear, zeros padding,
    align_corners=False) built by scatter-add; rows zero-padded to np_pad."""
    gx = grids_norm[..., 0]
    gy = grids_norm[..., 1]
    ix = ((gx + 1.0) * Wf - 1.0) * 0.5
    iy = ((gy + 1.0) * Hf - 1.0) * 0.5
    x0 = jnp.floor(ix)
    y0 = jnp.floor(iy)
    idx_list, w_list = [], []
    for xc, yc, wx, wy in ((x0, y0, x0 + 1.0 - ix, y0 + 1.0 - iy),
                           (x0 + 1.0, y0, ix - x0, y0 + 1.0 - iy),
                           (x0, y0 + 1.0, x0 + 1.0 - ix, iy - y0),
                           (x0 + 1.0, y0 + 1.0, ix - x0, iy - y0)):
        valid = (xc >= 0) & (xc <= Wf - 1) & (yc >= 0) & (yc <= Hf - 1)
        xi = jnp.clip(xc, 0, Wf - 1).astype(jnp.int32)
        yi = jnp.clip(yc, 0, Hf - 1).astype(jnp.int32)
        idx_list.append(yi * Wf + xi)
        w_list.append((wx * wy) * valid.astype(jnp.float32))
    B, N, P = gx.shape
    HW = Hf * Wf
    idx = jnp.stack(idx_list, axis=-1).reshape(B, N * P, 4)
    w = jnp.stack(w_list, axis=-1).reshape(B, N * P, 4)
    out = jnp.zeros((B, np_pad, HW), jnp.float32)
    b_ix = jnp.arange(B)[:, None, None]
    r_ix = jnp.arange(N * P)[None, :, None]
    return out.at[b_ix, r_ix, idx].add(w)                        # (B, np_pad, HW)


def _bilinear_resize_matrix_1d(in_size, out_size):
    """1-D weights of F.interpolate(mode='bilinear', align_corners=False)."""
    i = jnp.arange(out_size, dtype=jnp.float32)
    src = jnp.maximum((i + 0.5) * (in_size / out_size) - 0.5, 0.0)
    i0f = jnp.floor(src)
    frac = src - i0f
    i0 = i0f.astype(jnp.int32)
    i1 = jnp.minimum(i0 + 1, in_size - 1)
    return (jax.nn.one_hot(i0, in_size, dtype=jnp.float32) * (1.0 - frac)[:, None]
            + jax.nn.one_hot(i1, in_size, dtype=jnp.float32) * frac[:, None])


def make_resize_operator(Hf, Wf, S):
    Rh = _bilinear_resize_matrix_1d(Hf, S)
    Rw = _bilinear_resize_matrix_1d(Wf, S)
    R = (Rh[:, None, :, None] * Rw[None, :, None, :]).reshape(S * S, Hf * Wf)
    return R.T                                                   # (Hf*Wf, S*S)


def _shuffle_perm(key, B):
    idx_shuffle = jax.random.permutation(key, B)
    idx_unshuffle = jnp.argsort(idx_shuffle)
    return idx_shuffle, idx_unshuffle


# ----------------------------------------------------------------------------
# PLRC forward (pure function, wrapped in a single jax.jit)
# ----------------------------------------------------------------------------

def plrc_forward(w_q, w_k, xs, xs_2, masks_all, shuffle_key, *,
                 m, mask_size, keep_point, training):
    S = mask_size
    B, Cin, H, W = xs[0].shape
    Hf, Wf = H // 2, W // 2
    D = w_q.shape[1]
    # batch-independent resize operator, hoisted out of the view loop,
    # cast to bf16 once (halves the DMA bytes into every encoder call)
    R = make_resize_operator(Hf, Wf, S).astype(jnp.bfloat16)       # (HW, S*S)

    def norm_grids(masks):
        return jnp.stack([masks[..., 0] / (S - 1) * 2.0 - 1.0,
                          masks[..., 1] / (S - 1) * 2.0 - 1.0], axis=-1)

    def itp_flat(itp):
        # (B, C, S*S) -> (B*S*S, C): torch's permute(0,2,3,1).reshape(-1, C)
        return itp.transpose(0, 2, 1).reshape(-1, itp.shape[1])

    fxs, fxs_pre, fxs_hist, fxs_hist_pre = [], [], [], []
    gxs, pxs = [], []
    fxs_moco, fxs_pre_moco, fxs_hist_moco, fxs_hist_pre_moco = [], [], [], []
    fxs_ts, fxs_pre_ts, fxs_hist_ts, fxs_hist_pre_ts = [], [], [], []
    fxs_ts_f, fxs_pre_ts_f, fxs_hist_ts_f, fxs_hist_pre_ts_f = [], [], [], []
    pixel_feat_q_arch = None
    new_w_k = w_k

    for gx, gx_2, is_key, masks in zip(xs, xs_2, [0, 1], masks_all):
        grids = norm_grids(masks)
        Nm, Pm = grids.shape[1], grids.shape[2]
        NP = Nm * Pm
        NP_pad = ((NP + 127) // 128) * 128          # lane-dense grid-sample output
        wb = _grid_sample_weights(grids, Hf, Wf, NP_pad).astype(jnp.bfloat16)

        if is_key:
            # momentum update of the key encoder (in-place Pallas EMA kernel)
            new_w_k = momentum_update(w_q, new_w_k, m)
            # batch shuffle (world_size == 1): the fused encoder is per-image,
            # so shuffle the inputs and unshuffle its per-image outputs
            # (equivalent to unshuffling fx before the resampling ops).
            idx_sh, idx_un = _shuffle_perm(jax.random.fold_in(shuffle_key, 1), B)
            px_s, pf_s, itp_s = encoder_fused(gx[idx_sh], new_w_k, wb[idx_sh], R)
            fx_moco = px_s[idx_un]                                # == mean(fx, (2,3))
            pf = pf_s[idx_un]
            itp = itp_s[idx_un]
            pixel_feat = pf[:, :, :NP].reshape(B, D, Nm, Pm)
            top = pixel_feat[:, :, 0, :].transpose(0, 2, 1)       # (B, P, C)
            qa = pixel_feat_q_arch[:, :, 0, :].transpose(0, 2, 1)  # (B, P, C)
            m_idx = pixel_match_indices(top, qa)                  # (B, P) fused kernel
            gathered = jnp.take_along_axis(top, m_idx[..., None], axis=1)
            pixel_feat_top = gathered.transpose(0, 2, 1)[:, :, None, :keep_point]
            fx_append = pixel_feat[:, :, 0, :].transpose(0, 2, 1).reshape(-1, D)
            fxs_hist_pre.append(fx_append)
            fxs_hist_pre_moco.append(fx_moco)
            fxs_pre.append(pixel_feat_top)
            fxs.append(pixel_feat_top)
            fxs_hist.append(pixel_feat_top)
            flat = itp_flat(itp)       # fx_2 == fx_2_f == fx in the stand-in
            fxs_pre_ts.append(flat); fxs_ts.append(flat); fxs_hist_ts.append(flat)
            fxs_pre_ts_f.append(flat); fxs_ts_f.append(flat); fxs_hist_ts_f.append(flat)
            fxs_pre_moco.append(fx_moco)
            fxs_moco.append(fx_moco)
            fxs_hist_moco.append(fx_moco)
        else:
            # query encoder
            px_q, pf_q, itp_q = encoder_fused(gx, w_q, wb, R)
            fx_moco = px_q
            pixel_feat_q = pf_q[:, :, :NP].reshape(B, D, Nm, Pm)
            pixel_feat_q_arch = pixel_feat_q[:, :, 0:1, :]
            fxs_pre.append(pixel_feat_q[:, :, 0:1, :keep_point])
            fxs.append(pixel_feat_q[:, :, 0:1, :keep_point])
            flat_q = itp_flat(itp_q)
            fxs_pre_ts.append(flat_q); fxs_ts.append(flat_q)
            fxs_pre_ts_f.append(flat_q); fxs_ts_f.append(flat_q)
            gxs.append(gx)
            pxs.append(px_q)
            # key encoder applied to the second view of the query image
            if training:
                idx_sh, idx_un = _shuffle_perm(jax.random.fold_in(shuffle_key, 0), B)
                _, pf2_s, itp2_s = encoder_fused(gx_2[idx_sh], new_w_k, wb[idx_sh], R)
                pf2 = pf2_s[idx_un]
                itp2 = itp2_s[idx_un]
            else:
                _, pf2, itp2 = encoder_fused(gx_2, new_w_k, wb, R)
            pixel_feat = pf2[:, :, :NP].reshape(B, D, Nm, Pm)
            fxs_pre.append(pixel_feat)
            fxs.append(pixel_feat)
            fxs_hist.append(pixel_feat)
            flat2 = itp_flat(itp2)
            fxs_pre_ts.append(flat2); fxs_ts.append(flat2); fxs_hist_ts.append(flat2)
            fxs_pre_ts_f.append(flat2); fxs_ts_f.append(flat2); fxs_hist_ts_f.append(flat2)
            fxs_pre_moco.append(fx_moco)
            fxs_moco.append(fx_moco)

    # TODO(synk): plrc_loss.SupConLoss / NCEAverage are external undefined modules;
    # mean-based surrogates keep the pipeline end-to-end with scalar losses.
    loss_image = sum(jnp.mean(t) for t in fxs_moco + fxs_pre_moco) / float(
        len(fxs_moco) + len(fxs_pre_moco))
    loss_point = sum(jnp.mean(t) for t in fxs + fxs_ts) / float(
        len(fxs) + len(fxs_ts))
    return loss_image, loss_point, new_w_k


class PLRCPallas:
    def __init__(self, in_ch=4, dim=32, m=0.999, T=0.07,
                 mask_size=16, keep_point=16):
        self.m = m
        self.T = T
        self.mask_size = mask_size
        self.keep_point = keep_point
        self.training = True
        key = jax.random.PRNGKey(42)
        self.w_q = jax.random.normal(key, (in_ch, dim), jnp.float32) * 0.1
        self.w_k = self.w_q.copy()     # explicit copy: param_k initialized from param_q
        # config values bound as trace-time constants; whole forward is one jit
        self._forward_jit = jax.jit(functools.partial(
            plrc_forward, m=self.m, mask_size=self.mask_size,
            keep_point=self.keep_point, training=self.training))

    def forward(self, xs, ids, cur_epoch, masks_all, obj, xs_2, shuffle_key):
        del ids, cur_epoch, obj    # only consumed by the external loss modules
        loss_image, loss_point, new_w_k = self._forward_jit(
            self.w_q, self.w_k, tuple(xs), tuple(xs_2), tuple(masks_all), shuffle_key)
        self.w_k = new_w_k
        return loss_image, loss_point


# ----------------------------------------------------------------------------
# Example run
# ----------------------------------------------------------------------------

if __name__ == "__main__":
    key = jax.random.PRNGKey(0)
    B, C_IN, H, W = 2, 4, 16, 16      # two views, NCHW inputs
    N_MASK, P_MASK = 4, 16            # masks per image, points per mask
    MASK_SIZE = 16
    KEEP_POINT = 16

    k1, k2, k3, k4, k5, k6, k7 = jax.random.split(key, 7)
    xs = [jax.random.normal(k1, (B, C_IN, H, W), jnp.float32),
          jax.random.normal(k2, (B, C_IN, H, W), jnp.float32)]
    xs_2 = [jax.random.normal(k3, (B, C_IN, H, W), jnp.float32),
            jax.random.normal(k4, (B, C_IN, H, W), jnp.float32)]
    masks_all = [
        jax.random.uniform(k5, (B, N_MASK, P_MASK, 2), jnp.float32,
                           minval=0.0, maxval=float(MASK_SIZE - 1)),
        jax.random.uniform(k6, (B, N_MASK, P_MASK, 2), jnp.float32,
                           minval=0.0, maxval=float(MASK_SIZE - 1)),
    ]
    ids = jnp.arange(B, dtype=jnp.int32)
    cur_epoch = 0
    obj = N_MASK

    model = PLRCPallas(in_ch=C_IN, dim=32, mask_size=MASK_SIZE,
                       keep_point=KEEP_POINT)
    loss_image, loss_point = model.forward(
        xs, ids, cur_epoch, masks_all, obj, xs_2, shuffle_key=k7)
    jax.block_until_ready((loss_image, loss_point))
    print("KERNEL_OK")
</pallas_src>

<mosaic_0001>
module attributes {stable_mosaic.version = 11 : i64} {
  func.func private @main(%arg0: i32) attributes {dimension_semantics = [#tpu.dimension_semantics<core_parallel>], iteration_bounds = array<i64: 2>, tpu.core_type = #tpu.core_type<sc_scalar_subcore>, window_params = []} {
    return
  }
}

module attributes {stable_mosaic.version = 11 : i64} {
  func.func private @main(%arg0: i32) attributes {dimension_semantics = [#tpu.dimension_semantics<core_parallel>], iteration_bounds = array<i64: 2>, tpu.core_type = #tpu.core_type<sc_scalar_subcore>, window_params = []} {
    return
  }
}

module attributes {stable_mosaic.version = 11 : i64} {
  func.func @_ema_kernel(%arg0: memref<4x32xf32, #tpu.memory_space<vmem>>, %arg1: memref<4x32xf32, #tpu.memory_space<vmem>>, %arg2: memref<4x32xf32, #tpu.memory_space<vmem>>) attributes {dimension_semantics = [], scalar_prefetch = 0 : i64, scratch_operands = 0 : i64, tpu.core_type = #tpu.core_type<tc>} {
    %c0 = arith.constant 0 : index
    %c0_0 = arith.constant 0 : index
    %0 = vector.load %arg1[%c0, %c0_0] : memref<4x32xf32, #tpu.memory_space<vmem>>, vector<4x32xf32>
    %cst = arith.constant 9.990000e-01 : f32
    %1 = vector.broadcast %cst : f32 to vector<4x32xf32>
    %2 = arith.mulf %0, %1 : vector<4x32xf32>
    %c0_1 = arith.constant 0 : index
    %c0_2 = arith.constant 0 : index
    %3 = vector.load %arg0[%c0_1, %c0_2] : memref<4x32xf32, #tpu.memory_space<vmem>>, vector<4x32xf32>
    %cst_3 = arith.constant 1.000000e-03 : f32
    %4 = vector.broadcast %cst_3 : f32 to vector<4x32xf32>
    %5 = arith.mulf %3, %4 : vector<4x32xf32>
    %6 = arith.addf %2, %5 : vector<4x32xf32>
    %c0_4 = arith.constant 0 : index
    %c0_5 = arith.constant 0 : index
    %7 = vector.load %arg2[%c0_4, %c0_5] : memref<4x32xf32, #tpu.memory_space<vmem>>, vector<4x32xf32>
    tpu.vector_store %arg2[%c0_4, %c0_5], %6 {strides = array<i32>} : memref<4x32xf32, #tpu.memory_space<vmem>>, vector<4x32xf32>,
    return
  }
}

module attributes {stable_mosaic.version = 11 : i64} {
  func.func @_encoder_fused_kernel(%arg0: i32, %arg1: memref<32x16xbf16, #tpu.memory_space<vmem>>, %arg2: memref<64x256xbf16, #tpu.memory_space<vmem>>, %arg3: memref<1x16x64xbf16, #tpu.memory_space<vmem>>, %arg4: memref<1x128x64xbf16, #tpu.memory_space<vmem>>, %arg5: memref<1x32x1xf32, #tpu.memory_space<vmem>>, %arg6: memref<1x32x128xf32, #tpu.memory_space<vmem>>, %arg7: memref<1x32x256xf32, #tpu.memory_space<vmem>>) attributes {dimension_semantics = [#tpu.dimension_semantics<parallel>], iteration_bounds = array<i64: 2>, scalar_prefetch = 0 : i64, scratch_operands = 0 : i64, tpu.core_type = #tpu.core_type<tc>, window_params = [{pipeline_mode = #tpu.pipeline_mode<synchronous>, transform_indices = @transform_0, window_bounds = array<i64: 32, 16>}, {pipeline_mode = #tpu.pipeline_mode<synchronous>, transform_indices = @transform_1, window_bounds = array<i64: 64, 256>}, {transform_indices = @transform_2, window_bounds = array<i64: 1, 16, 64>}, {transform_indices = @transform_3, window_bounds = array<i64: 1, 128, 64>}, {transform_indices = @transform_4, window_bounds = array<i64: 1, 32, 1>}, {transform_indices = @transform_5, window_bounds = array<i64: 1, 32, 128>}, {transform_indices = @transform_6, window_bounds = array<i64: 1, 32, 256>}]} {
    %c0 = arith.constant 0 : index
    %c0_0 = arith.constant 0 : index
    %0 = vector.load %arg1[%c0, %c0_0] : memref<32x16xbf16, #tpu.memory_space<vmem>>, vector<32x16xbf16>
    %c0_1 = arith.constant 0 : index
    %c0_2 = arith.constant 0 : index
    %c0_3 = arith.constant 0 : index
    %1 = vector.load %arg3[%c0_1, %c0_2, %c0_3] : memref<1x16x64xbf16, #tpu.memory_space<vmem>>, vector<1x16x64xbf16>
    %2 = vector.shape_cast %1 : vector<1x16x64xbf16> to vector<16x64xbf16>
    %cst = arith.constant dense<0.000000e+00> : vector<32x64xf32>
    %3 = tpu.matmul %0, %2, %cst {dimension_numbers = #tpu.dot_dimension_numbers<[1], [0], [0], [1], [0, 0, 1, 1], [], []>} : vector<32x16xbf16>, vector<16x64xbf16>, vector<32x64xf32> -> vector<32x64xf32>
    %cst_4 = arith.constant dense<0.000000e+00> : vector<32xf32>
    %4 = vector.multi_reduction <add>, %3, %cst_4 [1] : vector<32x64xf32> to vector<32xf32>
    %5 = vector.shape_cast %4 : vector<32xf32> to vector<32x1xf32>
    %cst_5 = arith.constant 6.400000e+01 : f32
    %6 = vector.broadcast %cst_5 : f32 to vector<32x1xf32>
    %7 = arith.divf %5, %6 : vector<32x1xf32>
    %c0_6 = arith.constant 0 : index
    %c0_7 = arith.constant 0 : index
    %c0_8 = arith.constant 0 : index
    %8 = vector.load %arg5[%c0_6, %c0_7, %c0_8] : memref<1x32x1xf32, #tpu.memory_space<vmem>>, vector<1x32x1xf32>
    %9 = vector.shape_cast %8 : vector<1x32x1xf32> to vector<32x1xf32>
    %10 = vector.shape_cast %7 : vector<32x1xf32> to vector<1x32x1xf32>
    tpu.vector_store %arg5[%c0_6, %c0_7, %c0_8], %10 {strides = array<i32>} : memref<1x32x1xf32, #tpu.memory_space<vmem>>, vector<1x32x1xf32>,
    %11 = arith.truncf %3 : vector<32x64xf32> to vector<32x64xbf16>
    %c0_9 = arith.constant 0 : index
    %c0_10 = arith.constant 0 : index
    %c0_11 = arith.constant 0 : index
    %12 = vector.load %arg4[%c0_9, %c0_10, %c0_11] : memref<1x128x64xbf16, #tpu.memory_space<vmem>>, vector<1x128x64xbf16>
    %13 = vector.shape_cast %12 : vector<1x128x64xbf16> to vector<128x64xbf16>
    %cst_12 = arith.constant dense<0.000000e+00> : vector<32x128xf32>
    %14 = tpu.matmul %11, %13, %cst_12 {dimension_numbers = #tpu.dot_dimension_numbers<[1], [1], [0], [0], [0, 0, 1, 0], [], []>} : vector<32x64xbf16>, vector<128x64xbf16>, vector<32x128xf32> -> vector<32x128xf32>
    %c0_13 = arith.constant 0 : index
    %c0_14 = arith.constant 0 : index
    %c0_15 = arith.constant 0 : index
    %15 = vector.load %arg6[%c0_13, %c0_14, %c0_15] : memref<1x32x128xf32, #tpu.memory_space<vmem>>, vector<1x32x128xf32>
    %16 = vector.shape_cast %15 : vector<1x32x128xf32> to vector<32x128xf32>
    %17 = vector.shape_cast %14 : vector<32x128xf32> to vector<1x32x128xf32>
    tpu.vector_store %arg6[%c0_13, %c0_14, %c0_15], %17 {strides = array<i32>} : memref<1x32x128xf32, #tpu.memory_space<vmem>>, vector<1x32x128xf32>,
    %c0_16 = arith.constant 0 : index
    %c0_17 = arith.constant 0 : index
    %18 = vector.load %arg2[%c0_16, %c0_17] : memref<64x256xbf16, #tpu.memory_space<vmem>>, vector<64x256xbf16>
    %cst_18 = arith.constant dense<0.000000e+00> : vector<32x256xf32>
    %19 = tpu.matmul %11, %18, %cst_18 {dimension_numbers = #tpu.dot_dimension_numbers<[1], [0], [0], [1], [0, 0, 1, 1], [], []>} : vector<32x64xbf16>, vector<64x256xbf16>, vector<32x256xf32> -> vector<32x256xf32>
    %c0_19 = arith.constant 0 : index
    %c0_20 = arith.constant 0 : index
    %c0_21 = arith.constant 0 : index
    %20 = vector.load %arg7[%c0_19, %c0_20, %c0_21] : memref<1x32x256xf32, #tpu.memory_space<vmem>>, vector<1x32x256xf32>
    %21 = vector.shape_cast %20 : vector<1x32x256xf32> to vector<32x256xf32>
    %22 = vector.shape_cast %19 : vector<32x256xf32> to vector<1x32x256xf32>
    tpu.vector_store %arg7[%c0_19, %c0_20, %c0_21], %22 {strides = array<i32>} : memref<1x32x256xf32, #tpu.memory_space<vmem>>, vector<1x32x256xf32>,
    return
  }
  func.func @transform_0(%arg0: i32) -> (i32, i32) {
    %c0_i32 = arith.constant 0 : i32
    %c0_i32_0 = arith.constant 0 : i32
    %c0_i32_1 = arith.constant 0 : i32
    return %c0_i32, %c0_i32_0 : i32, i32
  }
  func.func @transform_1(%arg0: i32) -> (i32, i32) {
    %c0_i32 = arith.constant 0 : i32
    %c0_i32_0 = arith.constant 0 : i32
    %c0_i32_1 = arith.constant 0 : i32
    return %c0_i32, %c0_i32_0 : i32, i32
  }
  func.func @transform_2(%arg0: i32) -> (i32, i32, i32) {
    %c0_i32 = arith.constant 0 : i32
    %c0_i32_0 = arith.constant 0 : i32
    %c0_i32_1 = arith.constant 0 : i32
    return %arg0, %c0_i32, %c0_i32_0 : i32, i32, i32
  }
  func.func @transform_3(%arg0: i32) -> (i32, i32, i32) {
    %c0_i32 = arith.constant 0 : i32
    %c0_i32_0 = arith.constant 0 : i32
    %c0_i32_1 = arith.constant 0 : i32
    return %arg0, %c0_i32, %c0_i32_0 : i32, i32, i32
  }
  func.func @transform_4(%arg0: i32) -> (i32, i32, i32) {
    %c0_i32 = arith.constant 0 : i32
    %c0_i32_0 = arith.constant 0 : i32
    %c0_i32_1 = arith.constant 0 : i32
    return %arg0, %c0_i32, %c0_i32_0 : i32, i32, i32
  }
  func.func @transform_5(%arg0: i32) -> (i32, i32, i32) {
    %c0_i32 = arith.constant 0 : i32
    %c0_i32_0 = arith.constant 0 : i32
    %c0_i32_1 = arith.constant 0 : i32
    return %arg0, %c0_i32, %c0_i32_0 : i32, i32, i32
  }
  func.func @transform_6(%arg0: i32) -> (i32, i32, i32) {
    %c0_i32 = arith.constant 0 : i32
    %c0_i32_0 = arith.constant 0 : i32
    %c0_i32_1 = arith.constant 0 : i32
    return %arg0, %c0_i32, %c0_i32_0 : i32, i32, i32
  }
}

module attributes {stable_mosaic.version = 11 : i64} {
  func.func @_match_kernel(%arg0: i32, %arg1: memref<1x16x32xf32, #tpu.memory_space<vmem>>, %arg2: memref<1x16x32xf32, #tpu.memory_space<vmem>>, %arg3: memref<1x1x16xi32, #tpu.memory_space<vmem>>) attributes {dimension_semantics = [#tpu.dimension_semantics<parallel>], iteration_bounds = array<i64: 2>, scalar_prefetch = 0 : i64, scratch_operands = 0 : i64, tpu.core_type = #tpu.core_type<tc>, window_params = [{transform_indices = @transform_0, window_bounds = array<i64: 1, 16, 32>}, {transform_indices = @transform_1, window_bounds = array<i64: 1, 16, 32>}, {transform_indices = @transform_2, window_bounds = array<i64: 1, 1, 16>}]} {
    %c0 = arith.constant 0 : index
    %c0_0 = arith.constant 0 : index
    %c0_1 = arith.constant 0 : index
    %0 = vector.load %arg1[%c0, %c0_0, %c0_1] : memref<1x16x32xf32, #tpu.memory_space<vmem>>, vector<1x16x32xf32>
    %1 = vector.shape_cast %0 : vector<1x16x32xf32> to vector<16x32xf32>
    %c0_2 = arith.constant 0 : index
    %c0_3 = arith.constant 0 : index
    %c0_4 = arith.constant 0 : index
    %2 = vector.load %arg2[%c0_2, %c0_3, %c0_4] : memref<1x16x32xf32, #tpu.memory_space<vmem>>, vector<1x16x32xf32>
    %3 = vector.shape_cast %2 : vector<1x16x32xf32> to vector<16x32xf32>
    %4 = arith.mulf %1, %1 : vector<16x32xf32>
    %cst = arith.constant dense<0.000000e+00> : vector<16xf32>
    %5 = vector.multi_reduction <add>, %4, %cst [1] : vector<16x32xf32> to vector<16xf32>
    %6 = vector.shape_cast %5 : vector<16xf32> to vector<16x1xf32>
    %cst_5 = arith.constant 1.000000e-24 : f32
    %7 = vector.broadcast %cst_5 : f32 to vector<16x1xf32>
    %8 = arith.maximumf %6, %7 : vector<16x1xf32>
    %9 = math.rsqrt %8 : vector<16x1xf32>
    %10 = vector.broadcast %9 : vector<16x1xf32> to vector<16x32xf32>
    %11 = arith.mulf %1, %10 : vector<16x32xf32>
    %12 = arith.mulf %3, %3 : vector<16x32xf32>
    %cst_6 = arith.constant dense<0.000000e+00> : vector<16xf32>
    %13 = vector.multi_reduction <add>, %12, %cst_6 [1] : vector<16x32xf32> to vector<16xf32>
    %14 = vector.shape_cast %13 : vector<16xf32> to vector<16x1xf32>
    %cst_7 = arith.constant 1.000000e-24 : f32
    %15 = vector.broadcast %cst_7 : f32 to vector<16x1xf32>
    %16 = arith.maximumf %14, %15 : vector<16x1xf32>
    %17 = math.rsqrt %16 : vector<16x1xf32>
    %18 = vector.broadcast %17 : vector<16x1xf32> to vector<16x32xf32>
    %19 = arith.mulf %3, %18 : vector<16x32xf32>
    %20 = arith.truncf %19 : vector<16x32xf32> to vector<16x32xbf16>
    %21 = arith.truncf %11 : vector<16x32xf32> to vector<16x32xbf16>
    %cst_8 = arith.constant dense<0.000000e+00> : vector<16x16xf32>
    %22 = tpu.matmul %20, %21, %cst_8 {dimension_numbers = #tpu.dot_dimension_numbers<[1], [1], [0], [0], [0, 0, 1, 0], [], []>} : vector<16x32xbf16>, vector<16x32xbf16>, vector<16x16xf32> -> vector<16x16xf32>
    %cst_9 = arith.constant dense<0xFF800000> : vector<16xf32>
    %23 = vector.multi_reduction <maximumf>, %22, %cst_9 [0] : vector<16x16xf32> to vector<16xf32>
    %24 = vector.shape_cast %23 : vector<16xf32> to vector<1x16xf32>
    %25 = tpu.iota {dimensions = array<i32: 0>} : vector<16x16xi32>
    %26 = arith.sitofp %25 : vector<16x16xi32> to vector<16x16xf32>
    %27 = vector.broadcast %24 : vector<1x16xf32> to vector<16x16xf32>
    %28 = arith.cmpf oge, %22, %27 : vector<16x16xf32>
    %cst_10 = arith.constant 1.600000e+01 : f32
    %29 = vector.broadcast %cst_10 : f32 to vector<16x16xf32>
    %30 = arith.select %28, %26, %29 : vector<16x16xi1>, vector<16x16xf32>
    %cst_11 = arith.constant dense<0x7F800000> : vector<16xf32>
    %31 = vector.multi_reduction <minimumf>, %30, %cst_11 [0] : vector<16x16xf32> to vector<16xf32>
    %32 = vector.shape_cast %31 : vector<16xf32> to vector<1x16xf32>
    %33 = arith.fptosi %32 : vector<1x16xf32> to vector<1x16xi32>
    %c0_12 = arith.constant 0 : index
    %c0_13 = arith.constant 0 : index
    %c0_14 = arith.constant 0 : index
    %34 = vector.load %arg3[%c0_12, %c0_13, %c0_14] : memref<1x1x16xi32, #tpu.memory_space<vmem>>, vector<1x1x16xi32>
    %35 = vector.shape_cast %34 : vector<1x1x16xi32> to vector<1x16xi32>
    %36 = vector.shape_cast %33 : vector<1x16xi32> to vector<1x1x16xi32>
    tpu.vector_store %arg3[%c0_12, %c0_13, %c0_14], %36 {strides = array<i32>} : memref<1x1x16xi32, #tpu.memory_space<vmem>>, vector<1x1x16xi32>,
    return
  }
  func.func @transform_0(%arg0: i32) -> (i32, i32, i32) {
    %c0_i32 = arith.constant 0 : i32
    %c0_i32_0 = arith.constant 0 : i32
    %c0_i32_1 = arith.constant 0 : i32
    return %arg0, %c0_i32, %c0_i32_0 : i32, i32, i32
  }
  func.func @transform_1(%arg0: i32) -> (i32, i32, i32) {
    %c0_i32 = arith.constant 0 : i32
    %c0_i32_0 = arith.constant 0 : i32
    %c0_i32_1 = arith.constant 0 : i32
    return %arg0, %c0_i32, %c0_i32_0 : i32, i32, i32
  }
  func.func @transform_2(%arg0: i32) -> (i32, i32, i32) {
    %c0_i32 = arith.constant 0 : i32
    %c0_i32_0 = arith.constant 0 : i32
    %c0_i32_1 = arith.constant 0 : i32
    return %arg0, %c0_i32, %c0_i32_0 : i32, i32, i32
  }
}

module attributes {stable_mosaic.version = 11 : i64} {
  func.func @_encoder_fused_kernel(%arg0: i32, %arg1: memref<32x16xbf16, #tpu.memory_space<vmem>>, %arg2: memref<64x256xbf16, #tpu.memory_space<vmem>>, %arg3: memref<1x16x64xbf16, #tpu.memory_space<vmem>>, %arg4: memref<1x128x64xbf16, #tpu.memory_space<vmem>>, %arg5: memref<1x32x1xf32, #tpu.memory_space<vmem>>, %arg6: memref<1x32x128xf32, #tpu.memory_space<vmem>>, %arg7: memref<1x32x256xf32, #tpu.memory_space<vmem>>) attributes {dimension_semantics = [#tpu.dimension_semantics<parallel>], iteration_bounds = array<i64: 2>, scalar_prefetch = 0 : i64, scratch_operands = 0 : i64, tpu.core_type = #tpu.core_type<tc>, window_params = [{pipeline_mode = #tpu.pipeline_mode<synchronous>, transform_indices = @transform_0, window_bounds = array<i64: 32, 16>}, {pipeline_mode = #tpu.pipeline_mode<synchronous>, transform_indices = @transform_1, window_bounds = array<i64: 64, 256>}, {transform_indices = @transform_2, window_bounds = array<i64: 1, 16, 64>}, {transform_indices = @transform_3, window_bounds = array<i64: 1, 128, 64>}, {transform_indices = @transform_4, window_bounds = array<i64: 1, 32, 1>}, {transform_indices = @transform_5, window_bounds = array<i64: 1, 32, 128>}, {transform_indices = @transform_6, window_bounds = array<i64: 1, 32, 256>}]} {
    %c0 = arith.constant 0 : index
    %c0_0 = arith.constant 0 : index
    %0 = vector.load %arg1[%c0, %c0_0] : memref<32x16xbf16, #tpu.memory_space<vmem>>, vector<32x16xbf16>
    %c0_1 = arith.constant 0 : index
    %c0_2 = arith.constant 0 : index
    %c0_3 = arith.constant 0 : index
    %1 = vector.load %arg3[%c0_1, %c0_2, %c0_3] : memref<1x16x64xbf16, #tpu.memory_space<vmem>>, vector<1x16x64xbf16>
    %2 = vector.shape_cast %1 : vector<1x16x64xbf16> to vector<16x64xbf16>
    %cst = arith.constant dense<0.000000e+00> : vector<32x64xf32>
    %3 = tpu.matmul %0, %2, %cst {dimension_numbers = #tpu.dot_dimension_numbers<[1], [0], [0], [1], [0, 0, 1, 1], [], []>} : vector<32x16xbf16>, vector<16x64xbf16>, vector<32x64xf32> -> vector<32x64xf32>
    %cst_4 = arith.constant dense<0.000000e+00> : vector<32xf32>
    %4 = vector.multi_reduction <add>, %3, %cst_4 [1] : vector<32x64xf32> to vector<32xf32>
    %5 = vector.shape_cast %4 : vector<32xf32> to vector<32x1xf32>
    %cst_5 = arith.constant 6.400000e+01 : f32
    %6 = vector.broadcast %cst_5 : f32 to vector<32x1xf32>
    %7 = arith.divf %5, %6 : vector<32x1xf32>
    %c0_6 = arith.constant 0 : index
    %c0_7 = arith.constant 0 : index
    %c0_8 = arith.constant 0 : index
    %8 = vector.load %arg5[%c0_6, %c0_7, %c0_8] : memref<1x32x1xf32, #tpu.memory_space<vmem>>, vector<1x32x1xf32>
    %9 = vector.shape_cast %8 : vector<1x32x1xf32> to vector<32x1xf32>
    %10 = vector.shape_cast %7 : vector<32x1xf32> to vector<1x32x1xf32>
    tpu.vector_store %arg5[%c0_6, %c0_7, %c0_8], %10 {strides = array<i32>} : memref<1x32x1xf32, #tpu.memory_space<vmem>>, vector<1x32x1xf32>,
    %11 = arith.truncf %3 : vector<32x64xf32> to vector<32x64xbf16>
    %c0_9 = arith.constant 0 : index
    %c0_10 = arith.constant 0 : index
    %c0_11 = arith.constant 0 : index
    %12 = vector.load %arg4[%c0_9, %c0_10, %c0_11] : memref<1x128x64xbf16, #tpu.memory_space<vmem>>, vector<1x128x64xbf16>
    %13 = vector.shape_cast %12 : vector<1x128x64xbf16> to vector<128x64xbf16>
    %cst_12 = arith.constant dense<0.000000e+00> : vector<32x128xf32>
    %14 = tpu.matmul %11, %13, %cst_12 {dimension_numbers = #tpu.dot_dimension_numbers<[1], [1], [0], [0], [0, 0, 1, 0], [], []>} : vector<32x64xbf16>, vector<128x64xbf16>, vector<32x128xf32> -> vector<32x128xf32>
    %c0_13 = arith.constant 0 : index
    %c0_14 = arith.constant 0 : index
    %c0_15 = arith.constant 0 : index
    %15 = vector.load %arg6[%c0_13, %c0_14, %c0_15] : memref<1x32x128xf32, #tpu.memory_space<vmem>>, vector<1x32x128xf32>
    %16 = vector.shape_cast %15 : vector<1x32x128xf32> to vector<32x128xf32>
    %17 = vector.shape_cast %14 : vector<32x128xf32> to vector<1x32x128xf32>
    tpu.vector_store %arg6[%c0_13, %c0_14, %c0_15], %17 {strides = array<i32>} : memref<1x32x128xf32, #tpu.memory_space<vmem>>, vector<1x32x128xf32>,
    %c0_16 = arith.constant 0 : index
    %c0_17 = arith.constant 0 : index
    %18 = vector.load %arg2[%c0_16, %c0_17] : memref<64x256xbf16, #tpu.memory_space<vmem>>, vector<64x256xbf16>
    %cst_18 = arith.constant dense<0.000000e+00> : vector<32x256xf32>
    %19 = tpu.matmul %11, %18, %cst_18 {dimension_numbers = #tpu.dot_dimension_numbers<[1], [0], [0], [1], [0, 0, 1, 1], [], []>} : vector<32x64xbf16>, vector<64x256xbf16>, vector<32x256xf32> -> vector<32x256xf32>
    %c0_19 = arith.constant 0 : index
    %c0_20 = arith.constant 0 : index
    %c0_21 = arith.constant 0 : index
    %20 = vector.load %arg7[%c0_19, %c0_20, %c0_21] : memref<1x32x256xf32, #tpu.memory_space<vmem>>, vector<1x32x256xf32>
    %21 = vector.shape_cast %20 : vector<1x32x256xf32> to vector<32x256xf32>
    %22 = vector.shape_cast %19 : vector<32x256xf32> to vector<1x32x256xf32>
    tpu.vector_store %arg7[%c0_19, %c0_20, %c0_21], %22 {strides = array<i32>} : memref<1x32x256xf32, #tpu.memory_space<vmem>>, vector<1x32x256xf32>,
    return
  }
  func.func @transform_0(%arg0: i32) -> (i32, i32) {
    %c0_i32 = arith.constant 0 : i32
    %c0_i32_0 = arith.constant 0 : i32
    %c0_i32_1 = arith.constant 0 : i32
    return %c0_i32, %c0_i32_0 : i32, i32
  }
  func.func @transform_1(%arg0: i32) -> (i32, i32) {
    %c0_i32 = arith.constant 0 : i32
    %c0_i32_0 = arith.constant 0 : i32
    %c0_i32_1 = arith.constant 0 : i32
    return %c0_i32, %c0_i32_0 : i32, i32
  }
  func.func @transform_2(%arg0: i32) -> (i32, i32, i32) {
    %c0_i32 = arith.constant 0 : i32
    %c0_i32_0 = arith.constant 0 : i32
    %c0_i32_1 = arith.constant 0 : i32
    return %arg0, %c0_i32, %c0_i32_0 : i32, i32, i32
  }
  func.func @transform_3(%arg0: i32) -> (i32, i32, i32) {
    %c0_i32 = arith.constant 0 : i32
    %c0_i32_0 = arith.constant 0 : i32
    %c0_i32_1 = arith.constant 0 : i32
    return %arg0, %c0_i32, %c0_i32_0 : i32, i32, i32
  }
  func.func @transform_4(%arg0: i32) -> (i32, i32, i32) {
    %c0_i32 = arith.constant 0 : i32
    %c0_i32_0 = arith.constant 0 : i32
    %c0_i32_1 = arith.constant 0 : i32
    return %arg0, %c0_i32, %c0_i32_0 : i32, i32, i32
  }
  func.func @transform_5(%arg0: i32) -> (i32, i32, i32) {
    %c0_i32 = arith.constant 0 : i32
    %c0_i32_0 = arith.constant 0 : i32
    %c0_i32_1 = arith.constant 0 : i32
    return %arg0, %c0_i32, %c0_i32_0 : i32, i32, i32
  }
  func.func @transform_6(%arg0: i32) -> (i32, i32, i32) {
    %c0_i32 = arith.constant 0 : i32
    %c0_i32_0 = arith.constant 0 : i32
    %c0_i32_1 = arith.constant 0 : i32
    return %arg0, %c0_i32, %c0_i32_0 : i32, i32, i32
  }
}

</mosaic_0001>

<llo_original>
// kernel: plrc_forward.6
$region0: #{plrc_forward.6}
  #allocation0 [shape = 'u32[]', space=smem, size = 0x4, offset = 0x4, fixed_abs, tag = 'smem constant byte address 0x4 - core index']
  #allocation1 [shape = 'u32[144,128]{1,0:T(1,128)}', space=vmem, size = 0x12000, scoped, tag = 'internal scratch']
  %s0 = inlined_call_operand.vmem [shape: f32[4,32], index: 0, kind: input, shape index: {}]
  %s1 = inlined_call_operand.vmem [shape: f32[4,32], index: 1, kind: input, shape index: {}, may-alias: {1,2}]
  %s2 = inlined_call_operand.vmem [shape: f32[4,32], index: 2, kind: output, shape index: {}, may-alias: {1,2}]
  %s3 = sld [smem:[#allocation0]]
  $region18: #{plrc_forward.6} parent=0
    _
  %s5 = ssub.s32 1, %s3
  %s6 = scalar_select 0, %s5, %s3
  // Predicated region
  $region2: #{plrc_forward.6} parent=0 // pred_check
    _
  $region3: #{plrc_forward.6} parent=0 // pred_check_branch
    %8 = sbr.rel (0) target = $region5
  $region4: #{plrc_forward.6} parent=0 // pred_region
    _
  $region5: #{plrc_forward.6} parent=0 // pred_fallthru
    _
  // Predicated region
  $region6: #{plrc_forward.6} parent=0 // pred_check
    _
  $region7: #{plrc_forward.6} parent=0 // pred_check_branch
    %10 = sbr.rel (0) target = $region9
  $region8: #{plrc_forward.6} parent=0 // pred_region
    _
  $region9: #{plrc_forward.6} parent=0 // pred_fallthru
    _
  %v11 = vld [vmem:[%s1] sm:$0xf]
  %v12 = vmul.f32 %v11, 0.999
  %v13 = vld [vmem:[%s0] sm:$0xf]
  %v14 = vmul.f32 %v13, 0.001
  %v15 = vadd.f32 %v12, %v14
  %vm16 = vcmask 257024
  %17 = vst.msk [vmem:[%s2] sm:$0xf] %vm16, %v15
  // Predicated region
  $region10: #{plrc_forward.6} parent=0 // pred_check
    _
  $region11: #{plrc_forward.6} parent=0 // pred_check_branch
    %19 = sbr.rel (0) target = $region13
  $region12: #{plrc_forward.6} parent=0 // pred_region
    _
  $region13: #{plrc_forward.6} parent=0 // pred_fallthru
    _
  // Predicated region
  $region14: #{plrc_forward.6} parent=0 // pred_check
    _
  $region15: #{plrc_forward.6} parent=0 // pred_check_branch
    %21 = sbr.rel (0) target = $region17
  $region16: #{plrc_forward.6} parent=0 // pred_region
    _
  $region17: #{plrc_forward.6} parent=0 // pred_fallthru
    _

// kernel: plrc_forward.5
$region0: #{plrc_forward.5}
  #allocation0 [shape = 'u32[]', space=smem, size = 0x4, offset = 0x4, fixed_abs, tag = 'smem constant byte address 0x4 - core index']
  #allocation1 [shape = 'u32[144,128]{1,0:T(1,128)}', space=vmem, size = 0x12000, scoped, tag = 'internal scratch']
  %s0 = inlined_call_operand.vmem [shape: bf16[32,16], index: 0, kind: input, shape index: {}]
  %s1 = inlined_call_operand.vmem [shape: bf16[64,256], index: 1, kind: input, shape index: {}]
  %s2 = inlined_call_operand.vmem [shape: bf16[2,16,64], index: 2, kind: input, shape index: {}]
  %s3 = inlined_call_operand.vmem [shape: bf16[2,128,64], index: 3, kind: input, shape index: {}]
  %s4 = inlined_call_operand.vmem [shape: f32[2,32,1], index: 4, kind: output, shape index: {0}]
  %s5 = inlined_call_operand.vmem [shape: f32[2,32,128], index: 5, kind: output, shape index: {1}]
  %s6 = inlined_call_operand.vmem [shape: f32[2,32,256], index: 6, kind: output, shape index: {2}]
  %7 = xla_tuple %s4, %s5, %s6
  %s8 = sld [smem:[#allocation0]]
  $region65: #{plrc_forward.5} parent=0
    _
  %s10 = ssub.s32 1, %s8
  %s11 = scalar_select 0, %s10, %s8
  loop: start=0, step=1, limit=4
  $region2: #{plrc_forward.5} parent=0 // loop_pre_header
    _
  $region3: #{plrc_forward.5} parent=0 // loop_header
    %s13 = sphi 0, %s17
    %p14 = scmp.ge.s32.totalorder %s13, 4
    %s21 = sphi 0, %s21
    %s23 = sphi 0, %s21
    %s24 = sphi 0, %s23
    %s38 = sphi 0, %s24
    %s42 = sphi 0, %s42
    %s44 = sphi 0, %s42
    %s45 = sphi 0, %s44
    %s59 = sphi 0, %s45
    %s65 = sphi 0, %s67
    %s68 = sphi 0, %s65
    %s69 = sphi 0, %s68
    %s85 = sphi 0, %s69
    %s91 = sphi 0, %s93
    %s94 = sphi 0, %s91
    %s95 = sphi 0, %s94
    %s111 = sphi 0, %s95
    %s117 = sphi 0, %s119
    %s120 = sphi 0, %s117
    %s121 = sphi 0, %s120
    %s137 = sphi 0, %s121
    %s143 = sphi 0, %s145
    %s146 = sphi 0, %s143
    %s147 = sphi 0, %s146
    %s163 = sphi 0, %s147
    %s169 = sphi 0, %s171
    %s172 = sphi 0, %s169
    %s173 = sphi 0, %s172
    %s189 = sphi 0, %s173
  $region4: #{plrc_forward.5} parent=0 // loop_header_branch
    %16 = sbr.rel (%p14) target = $region8
  $region5: #{plrc_forward.5} parent=0 // loop_body
    %s18 = ssub.s32 %s13, 1
    %s19 = ssub.s32 %s13, 2
    %s20 = sadd.s32 %s13, 1
    %s22 = sadd.s32 %s21, 1
    %p25 = scmp.eq.s32.totalorder %s13, 1
    %p26 = scmp.ne.s32.totalorder %s21, %s23
    %p27 = scmp.eq.s32.totalorder %s13, 0
    %p28 = por %p26, %p27
    %p29 = scmp.ne.s32.totalorder %s21, %s23
    %p30 = scmp.eq.s32.totalorder %s18, 1
    %p31 = por %p29, %p30
    %p32 = scmp.ne.s32.totalorder %s23, %s24
    %p33 = scmp.eq.s32.totalorder %s18, 0
    %p34 = por %p32, %p33
    %p35 = scmp.ne.s32.totalorder %s23, %s24
    %p36 = scmp.eq.s32.totalorder %s19, 1
    %p37 = por %p35, %p36
    %p39 = scmp.ne.s32.totalorder %s24, %s38
    %p40 = scmp.eq.s32.totalorder %s19, 0
    %p41 = por %p39, %p40
    %s43 = sadd.s32 %s42, 1
    %p46 = scmp.eq.s32.totalorder %s13, 1
    %p47 = scmp.ne.s32.totalorder %s42, %s44
    %p48 = scmp.eq.s32.totalorder %s13, 0
    %p49 = por %p47, %p48
    %p50 = scmp.ne.s32.totalorder %s42, %s44
    %p51 = scmp.eq.s32.totalorder %s18, 1
    %p52 = por %p50, %p51
    %p53 = scmp.ne.s32.totalorder %s44, %s45
    %p54 = scmp.eq.s32.totalorder %s18, 0
    %p55 = por %p53, %p54
    %p56 = scmp.ne.s32.totalorder %s44, %s45
    %p57 = scmp.eq.s32.totalorder %s19, 1
    %p58 = por %p56, %p57
    %p60 = scmp.ne.s32.totalorder %s45, %s59
    %p61 = scmp.eq.s32.totalorder %s19, 0
    %p62 = por %p60, %p61
    %s63 = ssub.s32 %s13, %s20
    %p64 = scmp.eq.s32.totalorder %s63, 0
    %s66 = sadd.s32 %s65, 1
    %s67 = scalar_select %p64, %s65, %s66
    %p70 = pneg %p64
    %p71 = scmp.eq.s32.totalorder %s13, 1
    %p72 = por %p70, %p71
    %p73 = scmp.ne.s32.totalorder %s65, %s68
    %p74 = scmp.eq.s32.totalorder %s13, 0
    %p75 = por %p73, %p74
    %p76 = scmp.ne.s32.totalorder %s65, %s68
    %p77 = scmp.eq.s32.totalorder %s18, 1
    %p78 = por %p76, %p77
    %p79 = scmp.ne.s32.totalorder %s68, %s69
    %p80 = scmp.eq.s32.totalorder %s18, 0
    %p81 = por %p79, %p80
    %p82 = scmp.ne.s32.totalorder %s68, %s69
    %p83 = scmp.eq.s32.totalorder %s19, 1
    %p84 = por %p82, %p83
    %p86 = scmp.ne.s32.totalorder %s69, %s85
    %p87 = scmp.eq.s32.totalorder %s19, 0
    %p88 = por %p86, %p87
    %s89 = ssub.s32 %s13, %s20
    %p90 = scmp.eq.s32.totalorder %s89, 0
    %s92 = sadd.s32 %s91, 1
    %s93 = scalar_select %p90, %s91, %s92
    %p96 = pneg %p90
    %p97 = scmp.eq.s32.totalorder %s13, 1
    %p98 = por %p96, %p97
    %p99 = scmp.ne.s32.totalorder %s91, %s94
    %p100 = scmp.eq.s32.totalorder %s13, 0
    %p101 = por %p99, %p100
    %p102 = scmp.ne.s32.totalorder %s91, %s94
    %p103 = scmp.eq.s32.totalorder %s18, 1
    %p104 = por %p102, %p103
    %p105 = scmp.ne.s32.totalorder %s94, %s95
    %p106 = scmp.eq.s32.totalorder %s18, 0
    %p107 = por %p105, %p106
    %p108 = scmp.ne.s32.totalorder %s94, %s95
    %p109 = scmp.eq.s32.totalorder %s19, 1
    %p110 = por %p108, %p109
    %p112 = scmp.ne.s32.totalorder %s95, %s111
    %p113 = scmp.eq.s32.totalorder %s19, 0
    %p114 = por %p112, %p113
    %s115 = ssub.s32 %s13, %s20
    %p116 = scmp.eq.s32.totalorder %s115, 0
    %s118 = sadd.s32 %s117, 1
    %s119 = scalar_select %p116, %s117, %s118
    %p122 = pneg %p116
    %p123 = scmp.eq.s32.totalorder %s13, 1
    %p124 = por %p122, %p123
    %p125 = scmp.ne.s32.totalorder %s117, %s120
    %p126 = scmp.eq.s32.totalorder %s13, 0
    %p127 = por %p125, %p126
    %p128 = scmp.ne.s32.totalorder %s117, %s120
    %p129 = scmp.eq.s32.totalorder %s18, 1
    %p130 = por %p128, %p129
    %p131 = scmp.ne.s32.totalorder %s120, %s121
    %p132 = scmp.eq.s32.totalorder %s18, 0
    %p133 = por %p131, %p132
    %p134 = scmp.ne.s32.totalorder %s120, %s121
    %p135 = scmp.eq.s32.totalorder %s19, 1
    %p136 = por %p134, %p135
    %p138 = scmp.ne.s32.totalorder %s121, %s137
    %p139 = scmp.eq.s32.totalorder %s19, 0
    %p140 = por %p138, %p139
    %s141 = ssub.s32 %s13, %s20
    %p142 = scmp.eq.s32.totalorder %s141, 0
    %s144 = sadd.s32 %s143, 1
    %s145 = scalar_select %p142, %s143, %s144
    %p148 = pneg %p142
    %p149 = scmp.eq.s32.totalorder %s13, 1
    %p150 = por %p148, %p149
    %p151 = scmp.ne.s32.totalorder %s143, %s146
    %p152 = scmp.eq.s32.totalorder %s13, 0
    %p153 = por %p151, %p152
    %p154 = scmp.ne.s32.totalorder %s143, %s146
    %p155 = scmp.eq.s32.totalorder %s18, 1
    %p156 = por %p154, %p155
    %p157 = scmp.ne.s32.totalorder %s146, %s147
    %p158 = scmp.eq.s32.totalorder %s18, 0
    %p159 = por %p157, %p158
    %p160 = scmp.ne.s32.totalorder %s146, %s147
    %p161 = scmp.eq.s32.totalorder %s19, 1
    %p162 = por %p160, %p161
    %p164 = scmp.ne.s32.totalorder %s147, %s163
    %p165 = scmp.eq.s32.totalorder %s19, 0
    %p166 = por %p164, %p165
    %s167 = ssub.s32 %s13, %s20
    %p168 = scmp.eq.s32.totalorder %s167, 0
    %s170 = sadd.s32 %s169, 1
    %s171 = scalar_select %p168, %s169, %s170
    %p174 = pneg %p168
    %p175 = scmp.eq.s32.totalorder %s13, 1
    %p176 = por %p174, %p175
    %p177 = scmp.ne.s32.totalorder %s169, %s172
    %p178 = scmp.eq.s32.totalorder %s13, 0
    %p179 = por %p177, %p178
    %p180 = scmp.ne.s32.totalorder %s169, %s172
    %p181 = scmp.eq.s32.totalorder %s18, 1
    %p182 = por %p180, %p181
    %p183 = scmp.ne.s32.totalorder %s172, %s173
    %p184 = scmp.eq.s32.totalorder %s18, 0
    %p185 = por %p183, %p184
    %p186 = scmp.ne.s32.totalorder %s172, %s173
    %p187 = scmp.eq.s32.totalorder %s19, 1
    %p188 = por %p186, %p187
    %p190 = scmp.ne.s32.totalorder %s173, %s189
    %p191 = scmp.eq.s32.totalorder %s19, 0
    %p192 = por %p190, %p191
    %p193 = scmp.le.s32.totalorder 1, %s13
    %p194 = scmp.lt.s32.totalorder %s13, 3
    %p195 = pnand %p193, %p194
    %p196 = pneg %p195
    // Predicated region
    $region9: #{plrc_forward.5} parent=5 // pred_check
      _
    $region10: #{plrc_forward.5} parent=5 // pred_check_branch
      %198 = sbr.rel (%p195) target = $region12
    $region11: #{plrc_forward.5} parent=5 // pred_region
      %s199 = ssub.s32 %s13, 1
      // Predicated region
      $region13: #{plrc_forward.5} parent=11 // pred_check
        %p200 = pneg %p34
      $region14: #{plrc_forward.5} parent=11 // pred_check_branch
        %202 = sbr.rel (%p200) target = $region16
      $region15: #{plrc_forward.5} parent=11 // pred_region
        _
      $region16: #{plrc_forward.5} parent=11 // pred_fallthru
        _
      // Predicated region
      $region17: #{plrc_forward.5} parent=11 // pred_check
        %p203 = pneg %p55
      $region18: #{plrc_forward.5} parent=11 // pred_check_branch
        %205 = sbr.rel (%p203) target = $region20
      $region19: #{plrc_forward.5} parent=11 // pred_region
        _
      $region20: #{plrc_forward.5} parent=11 // pred_fallthru
        _
    $region12: #{plrc_forward.5} parent=5 // pred_fallthru
      _
    %p206 = scmp.lt.s32.totalorder %s13, 2
    // Predicated region
    $region21: #{plrc_forward.5} parent=5 // pred_check
      %p207 = pneg %p206
    $region22: #{plrc_forward.5} parent=5 // pred_check_branch
      %209 = sbr.rel (%p207) target = $region24
    $region23: #{plrc_forward.5} parent=5 // pred_region
      // Predicated region
      $region25: #{plrc_forward.5} parent=23 // pred_check
        %p210 = pneg %p75
      $region26: #{plrc_forward.5} parent=23 // pred_check_branch
        %212 = sbr.rel (%p210) target = $region28
      $region27: #{plrc_forward.5} parent=23 // pred_region
        %p213 = scmp.lt.s32.totalorder %s13, 1
        %s214 = scalar_select %p213, %s13, 1
        %s215 = smul.addr %s214, 2
        %s216 = smul.addr %s215, 4
        %s217 = scalar_lea.vmem %s2, %s216
      $region28: #{plrc_forward.5} parent=23 // pred_fallthru
        _
      // Predicated region
      $region29: #{plrc_forward.5} parent=23 // pred_check
        %p218 = pneg %p101
      $region30: #{plrc_forward.5} parent=23 // pred_check_branch
        %220 = sbr.rel (%p218) target = $region32
      $region31: #{plrc_forward.5} parent=23 // pred_region
        %p221 = scmp.lt.s32.totalorder %s13, 1
        %s222 = scalar_select %p221, %s13, 1
        %s223 = smul.addr %s222, 16
        %s224 = smul.addr %s223, 4
        %s225 = scalar_lea.vmem %s3, %s224
      $region32: #{plrc_forward.5} parent=23 // pred_fallthru
        _
    $region24: #{plrc_forward.5} parent=5 // pred_fallthru
      _
    %p226 = scmp.le.s32.totalorder 1, %s13
    %p227 = scmp.lt.s32.totalorder %s13, 3
    %p228 = pnand %p226, %p227
    %p229 = pneg %p228
    // Predicated region
    $region33: #{plrc_forward.5} parent=5 // pred_check
      _
    $region34: #{plrc_forward.5} parent=5 // pred_check_branch
      %231 = sbr.rel (%p228) target = $region36
    $region35: #{plrc_forward.5} parent=5 // pred_region
      %s232 = ssub.s32 %s13, 1
      %p233 = pneg %p34
      %p234 = pneg %p31
      %p235 = pneg %p55
      %p236 = pneg %p52
      %p237 = scmp.lt.s32.totalorder %s18, 1
      %s238 = scalar_select %p237, %s18, 1
      %s239 = smul.addr %s238, 2
      %s240 = smul.addr %s239, 4
      %s241 = scalar_lea.vmem %s2, %s240
      %p242 = pneg %p81
      %p243 = pneg %p78
      %p244 = scmp.lt.s32.totalorder %s18, 1
      %s245 = scalar_select %p244, %s18, 1
      %s246 = smul.addr %s245, 16
      %s247 = smul.addr %s246, 4
      %s248 = scalar_lea.vmem %s3, %s247
      %p249 = pneg %p107
      %p250 = pneg %p104
      %p251 = pneg %p133
      %p252 = pneg %p130
      %p253 = scmp.lt.s32.totalorder %s18, 1
      %s254 = scalar_select %p253, %s18, 1
      %s255 = smul.addr %s254, 4
      %s256 = smul.addr %s255, 8
      %s257 = scalar_lea.vmem %s4, %s256
      %p258 = pneg %p159
      %p259 = pneg %p156
      %p260 = scmp.lt.s32.totalorder %s18, 1
      %s261 = scalar_select %p260, %s18, 1
      %s262 = smul.addr %s261, 4
      %s263 = smul.addr %s262, 8
      %s264 = scalar_lea.vmem %s5, %s263
      %p265 = pneg %p185
      %p266 = pneg %p182
      %p267 = scmp.lt.s32.totalorder %s18, 1
      %s268 = scalar_select %p267, %s18, 1
      %s269 = smul.addr %s268, 8
      %s270 = smul.addr %s269, 8
      %s271 = scalar_lea.vmem %s6, %s270
      %p272 = scmp.lt.s32.totalorder %s18, 1
      %s273 = scalar_select %p272, %s18, 1
      %s274 = smul.addr %s273, 2
      %s275 = smul.addr %s274, 4
      %s276 = scalar_lea.vmem %s2, %s275
      %p277 = scmp.lt.s32.totalorder %s18, 1
      %s278 = scalar_select %p277, %s18, 1
      %s279 = smul.addr %s278, 16
      %s280 = smul.addr %s279, 4
      %s281 = scalar_lea.vmem %s3, %s280
      %p282 = scmp.lt.s32.totalorder %s18, 1
      %s283 = scalar_select %p282, %s18, 1
      %s284 = smul.addr %s283, 4
      %s285 = smul.addr %s284, 8
      %s286 = scalar_lea.vmem %s4, %s285
      %p287 = scmp.lt.s32.totalorder %s18, 1
      %s288 = scalar_select %p287, %s18, 1
      %s289 = smul.addr %s288, 4
      %s290 = smul.addr %s289, 8
      %s291 = scalar_lea.vmem %s5, %s290
      %p292 = scmp.lt.s32.totalorder %s18, 1
      %s293 = scalar_select %p292, %s18, 1
      %s294 = smul.addr %s293, 8
      %s295 = smul.addr %s294, 8
      %s296 = scalar_lea.vmem %s6, %s295
      %v298 = vld [vmem:[%s0] sm:$0xf]
      %v299 = vld [vmem:[%s0 + $0x4] sm:$0xf]
      %v300 = vld [vmem:[%s0 + $0x8] sm:$0xf]
      %v301 = vld [vmem:[%s0 + $0xc] sm:$0xf]
      %v302 = vld [vmem:[%s276] sm:$0xf]
      %v303 = vld [vmem:[%s276 + $0x4] sm:$0xf]
      %v308 = vunpack.c.l.b16 %v298
      %v309 = vunpack.c.l.b16 %v299
      %v310 = vunpack.c.l.b16 %v300
      %v311 = vunpack.c.l.b16 %v301
      %v312 = vpack.c.b16 %v309, %v308
      %v313 = vpack.c.b16 %v311, %v310
      %v316 = vunpack.c.l.b16 %v302
      %v317 = vunpack.c.l.b16 %v303
      %v318 = vpack.c.b16 %v317, %v316
      %vm320 = vcmask 130048
      %v322 = vsel %vm320, %v312, 0
      %v325 = vsel %vm320, %v313, 0
      %327 = vmatprep.subr.bf16.mxu0 0
      %328 = vmatpush1.bf16.msra.mxu0 %v318
      %329 = vmatprep.subr.bf16.mxu0 0
      %330 = vmatpush1.bf16.msra.mxu0 0
      %331 = vmatprep.subr.bf16.mxu0 0
      %332 = vmatpush1.bf16.msra.mxu0 0
      %333 = vmatprep.subr.bf16.mxu0 0
      %334 = vmatpush1.bf16.msra.mxu0 0
      %335 = vmatprep.subr.bf16.mxu0 0
      %336 = vmatpush1.bf16.msra.mxu0 0
      %337 = vmatprep.subr.bf16.mxu0 0
      %338 = vmatpush1.bf16.msra.mxu0 0
      %339 = vmatprep.subr.bf16.mxu0 0
      %340 = vmatpush1.bf16.msra.mxu0 0
      %341 = vmatprep.subr.bf16.mxu0 0
      %342 = vmatpush1.bf16.msra.mxu0 0
      %343 = vmatprep.subr.bf16.mxu0 0
      %344 = vmatpush1.bf16.msra.mxu0 0
      %345 = vmatprep.subr.bf16.mxu0 0
      %346 = vmatpush1.bf16.msra.mxu0 0
      %347 = vmatprep.subr.bf16.mxu0 0
      %348 = vmatpush1.bf16.msra.mxu0 0
      %349 = vmatprep.subr.bf16.mxu0 0
      %350 = vmatpush1.bf16.msra.mxu0 0
      %351 = vmatprep.subr.bf16.mxu0 0
      %352 = vmatpush1.bf16.msra.mxu0 0
      %353 = vmatprep.subr.bf16.mxu0 0
      %354 = vmatpush1.bf16.msra.mxu0 0
      %355 = vmatprep.subr.bf16.mxu0 0
      %356 = vmatpush1.bf16.msra.mxu0 0
      %357 = vmatprep.subr.bf16.mxu0 0
      %358 = vmatpush1.bf16.msra.mxu0 0
      %359 = vmatprep.mubr.bf16.mxu0 0
      %360 = vmatmul.mubr.bf16.gmra.mrb[0].mxu0 %v322
      %v361 = vpop.f32.mrb[0].mxu0
      %v362 = vadd.f32 0.0, %v361
      %v363 = vpop.f32.mrb[0].mxu0
      %v364 = vpop.f32.mrb[0].mxu0
      %v365 = vadd.f32 0.0, %v364
      %v366 = vpop.f32.mrb[0].mxu0
      %367 = vmatprep.mubr.bf16.mxu0 0
      %368 = vmatmul.mubr.bf16.gmra.mrb[0].mxu0 %v325
      %v369 = vpop.f32.mrb[0].mxu0
      %v370 = vadd.f32 0.0, %v369
      %v371 = vpop.f32.mrb[0].mxu0
      %v372 = vpop.f32.mrb[0].mxu0
      %v373 = vadd.f32 0.0, %v372
      %v374 = vpop.f32.mrb[0].mxu0
      %375 = vdwg.mxu0
      %vm376 = vcmask 523264
      %v377 = vsel %vm376, %v362, 0.0
      %378 = vadd.xlane.f32.xlu0 %v377
      %v379 = vpop.xlane.xlu0 %378
      %v380 = vsel %vm376, %v365, 0.0
      %381 = vadd.xlane.f32.xlu0 %v380
      %v382 = vpop.xlane.xlu0 %381
      %v383 = vsel %vm376, %v370, 0.0
      %384 = vadd.xlane.f32.xlu0 %v383
      %v385 = vpop.xlane.xlu0 %384
      %v386 = vsel %vm376, %v373, 0.0
      %387 = vadd.xlane.f32.xlu0 %v386
      %v388 = vpop.xlane.xlu0 %387
      %v389 = vrcp.pop 64.0
      %v390 = vmul.f32 %v379, %v389
      %v391 = vmul.f32 %v382, %v389
      %v392 = vmul.f32 %v385, %v389
      %v393 = vmul.f32 %v388, %v389
      %vm394 = vcmask 7168
      %395 = vst.msk [vmem:[%s286] sm:$0xff] %vm394, %v390
      %396 = vst.msk [vmem:[%s286 + $0x8] sm:$0xff] %vm394, %v391
      %397 = vst.msk [vmem:[%s286 + $0x10] sm:$0xff] %vm394, %v392
      %398 = vst.msk [vmem:[%s286 + $0x18] sm:$0xff] %vm394, %v393
      %v399 = vpack.c.bf16 %v365, %v362
      %v400 = vpack.c.bf16 %v373, %v370
      %v401 = vld [vmem:[%s281] sm:$0xf]
      %v402 = vld [vmem:[%s281 + $0x4] sm:$0xf]
      %v403 = vld [vmem:[%s281 + $0x8] sm:$0xf]
      %v404 = vld [vmem:[%s281 + $0xc] sm:$0xf]
      %v405 = vld [vmem:[%s281 + $0x10] sm:$0xf]
      %v406 = vld [vmem:[%s281 + $0x14] sm:$0xf]
      %v407 = vld [vmem:[%s281 + $0x18] sm:$0xf]
      %v408 = vld [vmem:[%s281 + $0x1c] sm:$0xf]
      %v409 = vld [vmem:[%s281 + $0x20] sm:$0xf]
      %v410 = vld [vmem:[%s281 + $0x24] sm:$0xf]
      %v411 = vld [vmem:[%s281 + $0x28] sm:$0xf]
      %v412 = vld [vmem:[%s281 + $0x2c] sm:$0xf]
      %v413 = vld [vmem:[%s281 + $0x30] sm:$0xf]
      %v414 = vld [vmem:[%s281 + $0x34] sm:$0xf]
      %v415 = vld [vmem:[%s281 + $0x38] sm:$0xf]
      %v416 = vld [vmem:[%s281 + $0x3c] sm:$0xf]
      %v433 = vunpack.c.l.b16 %v401
      %v434 = vunpack.c.l.b16 %v402
      %v435 = vunpack.c.l.b16 %v403
      %v436 = vunpack.c.l.b16 %v404
      %v437 = vunpack.c.l.b16 %v405
      %v438 = vunpack.c.l.b16 %v406
      %v439 = vunpack.c.l.b16 %v407
      %v440 = vunpack.c.l.b16 %v408
      %v441 = vunpack.c.l.b16 %v409
      %v442 = vunpack.c.l.b16 %v410
      %v443 = vunpack.c.l.b16 %v411
      %v444 = vunpack.c.l.b16 %v412
      %v445 = vunpack.c.l.b16 %v413
      %v446 = vunpack.c.l.b16 %v414
      %v447 = vunpack.c.l.b16 %v415
      %v448 = vunpack.c.l.b16 %v416
      %v449 = vpack.c.b16 %v434, %v433
      %v450 = vpack.c.b16 %v436, %v435
      %v451 = vpack.c.b16 %v438, %v437
      %v452 = vpack.c.b16 %v440, %v439
      %v453 = vpack.c.b16 %v442, %v441
      %v454 = vpack.c.b16 %v444, %v443
      %v455 = vpack.c.b16 %v446, %v445
      %v456 = vpack.c.b16 %v448, %v447
      %v458 = vsel %vm376, %v399, 0
      %v461 = vsel %vm376, %v400, 0
      %v464 = vsel %vm376, %v449, 0
      %v467 = vsel %vm376, %v450, 0
      %v470 = vsel %vm376, %v451, 0
      %v473 = vsel %vm376, %v452, 0
      %v476 = vsel %vm376, %v453, 0
      %v479 = vsel %vm376, %v454, 0
      %v482 = vsel %vm376, %v455, 0
      %v485 = vsel %vm376, %v456, 0
      %487 = vmatprep.subr.bf16.mxu0 0
      %488 = vmatpush1.bf16.xpose.msra.mxu0 %v464
      %489 = vmatprep.subr.bf16.mxu0 0
      %490 = vmatpush1.bf16.xpose.msra.mxu0 %v467
      %491 = vmatprep.subr.bf16.mxu0 0
      %492 = vmatpush1.bf16.xpose.msra.mxu0 %v470
      %493 = vmatprep.subr.bf16.mxu0 0
      %494 = vmatpush1.bf16.xpose.msra.mxu0 %v473
      %495 = vmatprep.subr.bf16.mxu0 0
      %496 = vmatpush1.bf16.xpose.msra.mxu0 %v476
      %497 = vmatprep.subr.bf16.mxu0 0
      %498 = vmatpush1.bf16.xpose.msra.mxu0 %v479
      %499 = vmatprep.subr.bf16.mxu0 0
      %500 = vmatpush1.bf16.xpose.msra.mxu0 %v482
      %501 = vmatprep.subr.bf16.mxu0 0
      %502 = vmatpush1.bf16.xpose.msra.mxu0 %v485
      %503 = vmatprep.subr.bf16.mxu0 0
      %504 = vmatpush1.bf16.xpose.msra.mxu0 0
      %505 = vmatprep.subr.bf16.mxu0 0
      %506 = vmatpush1.bf16.xpose.msra.mxu0 0
      %507 = vmatprep.subr.bf16.mxu0 0
      %508 = vmatpush1.bf16.xpose.msra.mxu0 0
      %509 = vmatprep.subr.bf16.mxu0 0
      %510 = vmatpush1.bf16.xpose.msra.mxu0 0
      %511 = vmatprep.subr.bf16.mxu0 0
      %512 = vmatpush1.bf16.xpose.msra.mxu0 0
      %513 = vmatprep.subr.bf16.mxu0 0
      %514 = vmatpush1.bf16.xpose.msra.mxu0 0
      %515 = vmatprep.subr.bf16.mxu0 0
      %516 = vmatpush1.bf16.xpose.msra.mxu0 0
      %517 = vmatprep.subr.bf16.mxu0 0
      %518 = vmatpush1.bf16.xpose.msra.mxu0 0
      %519 = vmatprep.mubr.bf16.mxu0 0
      %520 = vmatmul.mubr.bf16.gmra.mrb[0].mxu0 %v458
      %v521 = vpop.f32.mrb[0].mxu0
      %v522 = vadd.f32 0.0, %v521
      %v523 = vpop.f32.mrb[0].mxu0
      %v524 = vpop.f32.mrb[0].mxu0
      %v525 = vadd.f32 0.0, %v524
      %v526 = vpop.f32.mrb[0].mxu0
      %527 = vmatprep.mubr.bf16.mxu0 0
      %528 = vmatmul.mubr.bf16.gmra.mrb[0].mxu0 %v461
      %v529 = vpop.f32.mrb[0].mxu0
      %v530 = vadd.f32 0.0, %v529
      %v531 = vpop.f32.mrb[0].mxu0
      %v532 = vpop.f32.mrb[0].mxu0
      %v533 = vadd.f32 0.0, %v532
      %v534 = vpop.f32.mrb[0].mxu0
      %535 = vdwg.mxu0
      %536 = vst [vmem:[%s291] sm:$0xff] %v522
      %537 = vst [vmem:[%s291 + $0x8] sm:$0xff] %v525
      %538 = vst [vmem:[%s291 + $0x10] sm:$0xff] %v530
      %539 = vst [vmem:[%s291 + $0x18] sm:$0xff] %v533
      %v540 = vld [vmem:[%s1] sm:$0xff]
      %v541 = vld [vmem:[%s1 + $0x8] sm:$0xff]
      %v542 = vld [vmem:[%s1 + $0x10] sm:$0xff]
      %v543 = vld [vmem:[%s1 + $0x18] sm:$0xff]
      %v544 = vld [vmem:[%s1 + $0x20] sm:$0xff]
      %v545 = vld [vmem:[%s1 + $0x28] sm:$0xff]
      %v546 = vld [vmem:[%s1 + $0x30] sm:$0xff]
      %v547 = vld [vmem:[%s1 + $0x38] sm:$0xff]
      %v556 = vunpack.c.l.b16 %v540
      %v557 = vunpack.c.h.b16 %v540
      %v558 = vunpack.c.l.b16 %v541
      %v559 = vunpack.c.h.b16 %v541
      %v560 = vunpack.c.l.b16 %v542
      %v561 = vunpack.c.h.b16 %v542
      %v562 = vunpack.c.l.b16 %v543
      %v563 = vunpack.c.h.b16 %v543
      %v564 = vunpack.c.l.b16 %v544
      %v565 = vunpack.c.h.b16 %v544
      %v566 = vunpack.c.l.b16 %v545
      %v567 = vunpack.c.h.b16 %v545
      %v568 = vunpack.c.l.b16 %v546
      %v569 = vunpack.c.h.b16 %v546
      %v570 = vunpack.c.l.b16 %v547
      %v571 = vunpack.c.h.b16 %v547
      %v572 = vpack.c.b16 %v558, %v556
      %v573 = vpack.c.b16 %v559, %v557
      %v574 = vpack.c.b16 %v562, %v560
      %v575 = vpack.c.b16 %v563, %v561
      %v576 = vpack.c.b16 %v566, %v564
      %v577 = vpack.c.b16 %v567, %v565
      %v578 = vpack.c.b16 %v570, %v568
      %v579 = vpack.c.b16 %v571, %v569
      %588 = vmatprep.subr.bf16.mxu0 %v573
      %589 = vmatpush1.bf16.msra.mxu0 %v572
      %590 = vmatprep.subr.bf16.mxu0 %v575
      %591 = vmatpush1.bf16.msra.mxu0 %v574
      %592 = vmatprep.subr.bf16.mxu0 %v577
      %593 = vmatpush1.bf16.msra.mxu0 %v576
      %594 = vmatprep.subr.bf16.mxu0 %v579
      %595 = vmatpush1.bf16.msra.mxu0 %v578
      %596 = vmatprep.subr.bf16.mxu0 0
      %597 = vmatpush1.bf16.msra.mxu0 0
      %598 = vmatprep.subr.bf16.mxu0 0
      %599 = vmatpush1.bf16.msra.mxu0 0
      %600 = vmatprep.subr.bf16.mxu0 0
      %601 = vmatpush1.bf16.msra.mxu0 0
      %602 = vmatprep.subr.bf16.mxu0 0
      %603 = vmatpush1.bf16.msra.mxu0 0
      %604 = vmatprep.subr.bf16.mxu0 0
      %605 = vmatpush1.bf16.msra.mxu0 0
      %606 = vmatprep.subr.bf16.mxu0 0
      %607 = vmatpush1.bf16.msra.mxu0 0
      %608 = vmatprep.subr.bf16.mxu0 0
      %609 = vmatpush1.bf16.msra.mxu0 0
      %610 = vmatprep.subr.bf16.mxu0 0
      %611 = vmatpush1.bf16.msra.mxu0 0
      %612 = vmatprep.subr.bf16.mxu0 0
      %613 = vmatpush1.bf16.msra.mxu0 0
      %614 = vmatprep.subr.bf16.mxu0 0
      %615 = vmatpush1.bf16.msra.mxu0 0
      %616 = vmatprep.subr.bf16.mxu0 0
      %617 = vmatpush1.bf16.msra.mxu0 0
      %618 = vmatprep.subr.bf16.mxu0 0
      %619 = vmatpush1.bf16.msra.mxu0 0
      %620 = vmatprep.mubr.bf16.mxu0 0
      %621 = vmatmul.mubr.bf16.gmra.mrb[0].mxu0 %v458
      %v622 = vpop.f32.mrb[0].mxu0
      %v623 = vadd.f32 0.0, %v622
      %v624 = vpop.f32.mrb[0].mxu0
      %v625 = vadd.f32 0.0, %v624
      %v626 = vpop.f32.mrb[0].mxu0
      %v627 = vadd.f32 0.0, %v626
      %v628 = vpop.f32.mrb[0].mxu0
      %v629 = vadd.f32 0.0, %v628
      %630 = vmatprep.mubr.bf16.mxu0 0
      %631 = vmatmul.mubr.bf16.gmra.mrb[0].mxu0 %v461
      %v632 = vpop.f32.mrb[0].mxu0
      %v633 = vadd.f32 0.0, %v632
      %v634 = vpop.f32.mrb[0].mxu0
      %v635 = vadd.f32 0.0, %v634
      %v636 = vpop.f32.mrb[0].mxu0
      %v637 = vadd.f32 0.0, %v636
      %v638 = vpop.f32.mrb[0].mxu0
      %v639 = vadd.f32 0.0, %v638
      %640 = vdwg.mxu0
      %641 = vst [vmem:[%s296] sm:$0xff] %v623
      %642 = vst [vmem:[%s296 + $0x8] sm:$0xff] %v625
      %643 = vst [vmem:[%s296 + $0x10] sm:$0xff] %v627
      %644 = vst [vmem:[%s296 + $0x18] sm:$0xff] %v629
      %645 = vst [vmem:[%s296 + $0x20] sm:$0xff] %v633
      %646 = vst [vmem:[%s296 + $0x28] sm:$0xff] %v635
      %647 = vst [vmem:[%s296 + $0x30] sm:$0xff] %v637
      %648 = vst [vmem:[%s296 + $0x38] sm:$0xff] %v639
      %p649 = scmp.lt.s32.totalorder %s18, 1
      %s650 = scalar_select %p649, %s18, 1
      %s651 = smul.addr %s650, 4
      %s652 = smul.addr %s651, 8
      %s653 = scalar_lea.vmem %s4, %s652
      %p654 = scmp.lt.s32.totalorder %s18, 1
      %s655 = scalar_select %p654, %s18, 1
      %s656 = smul.addr %s655, 4
      %s657 = smul.addr %s656, 8
      %s658 = scalar_lea.vmem %s5, %s657
      %p659 = scmp.lt.s32.totalorder %s18, 1
      %s660 = scalar_select %p659, %s18, 1
      %s661 = smul.addr %s660, 8
      %s662 = smul.addr %s661, 8
      %s663 = scalar_lea.vmem %s6, %s662
      // Predicated region
      $region37: #{plrc_forward.5} parent=35 // pred_check
        %p664 = pneg %p130
      $region38: #{plrc_forward.5} parent=35 // pred_check_branch
        %666 = sbr.rel (%p664) target = $region40
      $region39: #{plrc_forward.5} parent=35 // pred_region
        _
      $region40: #{plrc_forward.5} parent=35 // pred_fallthru
        _
      // Predicated region
      $region41: #{plrc_forward.5} parent=35 // pred_check
        %p667 = pneg %p156
      $region42: #{plrc_forward.5} parent=35 // pred_check_branch
        %669 = sbr.rel (%p667) target = $region44
      $region43: #{plrc_forward.5} parent=35 // pred_region
        _
      $region44: #{plrc_forward.5} parent=35 // pred_fallthru
        _
      // Predicated region
      $region45: #{plrc_forward.5} parent=35 // pred_check
        %p670 = pneg %p182
      $region46: #{plrc_forward.5} parent=35 // pred_check_branch
        %672 = sbr.rel (%p670) target = $region48
      $region47: #{plrc_forward.5} parent=35 // pred_region
        _
      $region48: #{plrc_forward.5} parent=35 // pred_fallthru
        _
    $region36: #{plrc_forward.5} parent=5 // pred_fallthru
      _
    %p673 = scmp.le.s32.totalorder 2, %s13
    // Predicated region
    $region49: #{plrc_forward.5} parent=5 // pred_check
      %p674 = pneg %p673
    $region50: #{plrc_forward.5} parent=5 // pred_check_branch
      %676 = sbr.rel (%p674) target = $region52
    $region51: #{plrc_forward.5} parent=5 // pred_region
      %s677 = ssub.s32 %s13, 2
      // Predicated region
      $region53: #{plrc_forward.5} parent=51 // pred_check
        %p678 = pneg %p136
      $region54: #{plrc_forward.5} parent=51 // pred_check_branch
        %680 = sbr.rel (%p678) target = $region56
      $region55: #{plrc_forward.5} parent=51 // pred_region
        %p681 = scmp.lt.s32.totalorder %s19, 1
        %s682 = scalar_select %p681, %s19, 1
        %s683 = smul.addr %s682, 4
        %s684 = smul.addr %s683, 8
        %s685 = scalar_lea.vmem %s4, %s684
      $region56: #{plrc_forward.5} parent=51 // pred_fallthru
        _
      // Predicated region
      $region57: #{plrc_forward.5} parent=51 // pred_check
        %p686 = pneg %p162
      $region58: #{plrc_forward.5} parent=51 // pred_check_branch
        %688 = sbr.rel (%p686) target = $region60
      $region59: #{plrc_forward.5} parent=51 // pred_region
        %p689 = scmp.lt.s32.totalorder %s19, 1
        %s690 = scalar_select %p689, %s19, 1
        %s691 = smul.addr %s690, 4
        %s692 = smul.addr %s691, 8
        %s693 = scalar_lea.vmem %s5, %s692
      $region60: #{plrc_forward.5} parent=51 // pred_fallthru
        _
      // Predicated region
      $region61: #{plrc_forward.5} parent=51 // pred_check
        %p694 = pneg %p188
      $region62: #{plrc_forward.5} parent=51 // pred_check_branch
        %696 = sbr.rel (%p694) target = $region64
      $region63: #{plrc_forward.5} parent=51 // pred_region
        %p697 = scmp.lt.s32.totalorder %s19, 1
        %s698 = scalar_select %p697, %s19, 1
        %s699 = smul.addr %s698, 8
        %s700 = smul.addr %s699, 8
        %s701 = scalar_lea.vmem %s6, %s700
      $region64: #{plrc_forward.5} parent=51 // pred_fallthru
        _
    $region52: #{plrc_forward.5} parent=5 // pred_fallthru
      _
  $region6: #{plrc_forward.5} parent=0 // loop_footer
    %s17 = sadd.s32 1, %s13
  $region7: #{plrc_forward.5} parent=0 // loop_footer_branch
    %12 = sbr.rel target = $region3
  $region8: #{plrc_forward.5} parent=0 // loop_exit
    _

// kernel: plrc_forward.9
$region0: #{plrc_forward.9}
  #allocation0 [shape = 'u32[]', space=smem, size = 0x4, offset = 0x4, fixed_abs, tag = 'smem constant byte address 0x4 - core index']
  #allocation1 [shape = 'u32[144,128]{1,0:T(1,128)}', space=vmem, size = 0x12000, scoped, tag = 'internal scratch']
  %s0 = inlined_call_operand.vmem [shape: f32[2,16,32], index: 0, kind: input, shape index: {}]
  %s1 = inlined_call_operand.vmem [shape: f32[2,16,32], index: 1, kind: input, shape index: {}]
  %s2 = inlined_call_operand.vmem [shape: s32[2,1,16], index: 2, kind: output, shape index: {}]
  %s3 = sld [smem:[#allocation0]]
  $region41: #{plrc_forward.9} parent=0
    _
  %s5 = ssub.s32 1, %s3
  %s6 = scalar_select 0, %s5, %s3
  loop: start=0, step=1, limit=4
  $region2: #{plrc_forward.9} parent=0 // loop_pre_header
    _
  $region3: #{plrc_forward.9} parent=0 // loop_header
    %s8 = sphi 0, %s12
    %p9 = scmp.ge.s32.totalorder %s8, 4
    %s18 = sphi 0, %s20
    %s21 = sphi 0, %s18
    %s22 = sphi 0, %s21
    %s38 = sphi 0, %s22
    %s44 = sphi 0, %s46
    %s47 = sphi 0, %s44
    %s48 = sphi 0, %s47
    %s64 = sphi 0, %s48
    %s70 = sphi 0, %s72
    %s73 = sphi 0, %s70
    %s74 = sphi 0, %s73
    %s90 = sphi 0, %s74
  $region4: #{plrc_forward.9} parent=0 // loop_header_branch
    %11 = sbr.rel (%p9) target = $region8
  $region5: #{plrc_forward.9} parent=0 // loop_body
    %s13 = ssub.s32 %s8, 1
    %s14 = ssub.s32 %s8, 2
    %s15 = sadd.s32 %s8, 1
    %s16 = ssub.s32 %s8, %s15
    %p17 = scmp.eq.s32.totalorder %s16, 0
    %s19 = sadd.s32 %s18, 1
    %s20 = scalar_select %p17, %s18, %s19
    %p23 = pneg %p17
    %p24 = scmp.eq.s32.totalorder %s8, 1
    %p25 = por %p23, %p24
    %p26 = scmp.ne.s32.totalorder %s18, %s21
    %p27 = scmp.eq.s32.totalorder %s8, 0
    %p28 = por %p26, %p27
    %p29 = scmp.ne.s32.totalorder %s18, %s21
    %p30 = scmp.eq.s32.totalorder %s13, 1
    %p31 = por %p29, %p30
    %p32 = scmp.ne.s32.totalorder %s21, %s22
    %p33 = scmp.eq.s32.totalorder %s13, 0
    %p34 = por %p32, %p33
    %p35 = scmp.ne.s32.totalorder %s21, %s22
    %p36 = scmp.eq.s32.totalorder %s14, 1
    %p37 = por %p35, %p36
    %p39 = scmp.ne.s32.totalorder %s22, %s38
    %p40 = scmp.eq.s32.totalorder %s14, 0
    %p41 = por %p39, %p40
    %s42 = ssub.s32 %s8, %s15
    %p43 = scmp.eq.s32.totalorder %s42, 0
    %s45 = sadd.s32 %s44, 1
    %s46 = scalar_select %p43, %s44, %s45
    %p49 = pneg %p43
    %p50 = scmp.eq.s32.totalorder %s8, 1
    %p51 = por %p49, %p50
    %p52 = scmp.ne.s32.totalorder %s44, %s47
    %p53 = scmp.eq.s32.totalorder %s8, 0
    %p54 = por %p52, %p53
    %p55 = scmp.ne.s32.totalorder %s44, %s47
    %p56 = scmp.eq.s32.totalorder %s13, 1
    %p57 = por %p55, %p56
    %p58 = scmp.ne.s32.totalorder %s47, %s48
    %p59 = scmp.eq.s32.totalorder %s13, 0
    %p60 = por %p58, %p59
    %p61 = scmp.ne.s32.totalorder %s47, %s48
    %p62 = scmp.eq.s32.totalorder %s14, 1
    %p63 = por %p61, %p62
    %p65 = scmp.ne.s32.totalorder %s48, %s64
    %p66 = scmp.eq.s32.totalorder %s14, 0
    %p67 = por %p65, %p66
    %s68 = ssub.s32 %s8, %s15
    %p69 = scmp.eq.s32.totalorder %s68, 0
    %s71 = sadd.s32 %s70, 1
    %s72 = scalar_select %p69, %s70, %s71
    %p75 = pneg %p69
    %p76 = scmp.eq.s32.totalorder %s8, 1
    %p77 = por %p75, %p76
    %p78 = scmp.ne.s32.totalorder %s70, %s73
    %p79 = scmp.eq.s32.totalorder %s8, 0
    %p80 = por %p78, %p79
    %p81 = scmp.ne.s32.totalorder %s70, %s73
    %p82 = scmp.eq.s32.totalorder %s13, 1
    %p83 = por %p81, %p82
    %p84 = scmp.ne.s32.totalorder %s73, %s74
    %p85 = scmp.eq.s32.totalorder %s13, 0
    %p86 = por %p84, %p85
    %p87 = scmp.ne.s32.totalorder %s73, %s74
    %p88 = scmp.eq.s32.totalorder %s14, 1
    %p89 = por %p87, %p88
    %p91 = scmp.ne.s32.totalorder %s74, %s90
    %p92 = scmp.eq.s32.totalorder %s14, 0
    %p93 = por %p91, %p92
    %p94 = scmp.le.s32.totalorder 1, %s8
    %p95 = scmp.lt.s32.totalorder %s8, 3
    %p96 = pnand %p94, %p95
    %p97 = pneg %p96
    // Predicated region
    $region9: #{plrc_forward.9} parent=5 // pred_check
      _
    $region10: #{plrc_forward.9} parent=5 // pred_check_branch
      %99 = sbr.rel (%p96) target = $region12
    $region11: #{plrc_forward.9} parent=5 // pred_region
      %s100 = ssub.s32 %s8, 1
    $region12: #{plrc_forward.9} parent=5 // pred_fallthru
      _
    %p101 = scmp.lt.s32.totalorder %s8, 2
    // Predicated region
    $region13: #{plrc_forward.9} parent=5 // pred_check
      %p102 = pneg %p101
    $region14: #{plrc_forward.9} parent=5 // pred_check_branch
      %104 = sbr.rel (%p102) target = $region16
    $region15: #{plrc_forward.9} parent=5 // pred_region
      // Predicated region
      $region17: #{plrc_forward.9} parent=15 // pred_check
        %p105 = pneg %p28
      $region18: #{plrc_forward.9} parent=15 // pred_check_branch
        %107 = sbr.rel (%p105) target = $region20
      $region19: #{plrc_forward.9} parent=15 // pred_region
        %p108 = scmp.lt.s32.totalorder %s8, 1
        %s109 = scalar_select %p108, %s8, 1
        %s110 = smul.addr %s109, 2
        %s111 = smul.addr %s110, 8
        %s112 = scalar_lea.vmem %s0, %s111
      $region20: #{plrc_forward.9} parent=15 // pred_fallthru
        _
      // Predicated region
      $region21: #{plrc_forward.9} parent=15 // pred_check
        %p113 = pneg %p54
      $region22: #{plrc_forward.9} parent=15 // pred_check_branch
        %115 = sbr.rel (%p113) target = $region24
      $region23: #{plrc_forward.9} parent=15 // pred_region
        %p116 = scmp.lt.s32.totalorder %s8, 1
        %s117 = scalar_select %p116, %s8, 1
        %s118 = smul.addr %s117, 2
        %s119 = smul.addr %s118, 8
        %s120 = scalar_lea.vmem %s1, %s119
      $region24: #{plrc_forward.9} parent=15 // pred_fallthru
        _
    $region16: #{plrc_forward.9} parent=5 // pred_fallthru
      _
    %p121 = scmp.le.s32.totalorder 1, %s8
    %p122 = scmp.lt.s32.totalorder %s8, 3
    %p123 = pnand %p121, %p122
    %p124 = pneg %p123
    // Predicated region
    $region25: #{plrc_forward.9} parent=5 // pred_check
      _
    $region26: #{plrc_forward.9} parent=5 // pred_check_branch
      %126 = sbr.rel (%p123) target = $region28
    $region27: #{plrc_forward.9} parent=5 // pred_region
      %s127 = ssub.s32 %s8, 1
      %p128 = scmp.lt.s32.totalorder %s13, 1
      %s129 = scalar_select %p128, %s13, 1
      %s130 = smul.addr %s129, 2
      %s131 = smul.addr %s130, 8
      %s132 = scalar_lea.vmem %s0, %s131
      %p133 = pneg %p34
      %p134 = pneg %p31
      %p135 = scmp.lt.s32.totalorder %s13, 1
      %s136 = scalar_select %p135, %s13, 1
      %s137 = smul.addr %s136, 2
      %s138 = smul.addr %s137, 8
      %s139 = scalar_lea.vmem %s1, %s138
      %p140 = pneg %p60
      %p141 = pneg %p57
      %p142 = pneg %p86
      %p143 = pneg %p83
      %p144 = scmp.lt.s32.totalorder %s13, 1
      %s145 = scalar_select %p144, %s13, 1
      %s146 = scalar_lea.vmem %s2, %s145
      %p147 = scmp.lt.s32.totalorder %s13, 1
      %s148 = scalar_select %p147, %s13, 1
      %s149 = smul.addr %s148, 2
      %s150 = smul.addr %s149, 8
      %s151 = scalar_lea.vmem %s0, %s150
      %p152 = scmp.lt.s32.totalorder %s13, 1
      %s153 = scalar_select %p152, %s13, 1
      %s154 = smul.addr %s153, 2
      %s155 = smul.addr %s154, 8
      %s156 = scalar_lea.vmem %s1, %s155
      %p157 = scmp.lt.s32.totalorder %s13, 1
      %s158 = scalar_select %p157, %s13, 1
      %s159 = scalar_lea.vmem %s2, %s158
      %v161 = vld [vmem:[%s151] sm:$0xff]
      %v162 = vld [vmem:[%s151 + $0x8] sm:$0xff]
      %v163 = vld [vmem:[%s156] sm:$0xff]
      %v164 = vld [vmem:[%s156 + $0x8] sm:$0xff]
      %v165 = vmul.f32 %v161, %v161
      %v166 = vmul.f32 %v162, %v162
      %vm167 = vcmask 261120
      %v168 = vsel %vm167, %v165, 0.0
      %169 = vadd.xlane.f32.xlu0 %v168
      %v170 = vpop.xlane.xlu0 %169
      %v171 = vsel %vm167, %v166, 0.0
      %172 = vadd.xlane.f32.xlu0 %v171
      %v173 = vpop.xlane.xlu0 %172
      %v174 = vmax.f32 %v170, 1e-24
      %v175 = vmax.f32 %v173, 1e-24
      %v176 = vrsqrt.pop %v174
      %v177 = vrsqrt.pop %v175
      %v178 = vmul.f32 %v161, %v176
      %v179 = vmul.f32 %v162, %v177
      %v180 = vmul.f32 %v163, %v163
      %v181 = vmul.f32 %v164, %v164
      %v182 = vsel %vm167, %v180, 0.0
      %183 = vadd.xlane.f32.xlu0 %v182
      %v184 = vpop.xlane.xlu0 %183
      %v185 = vsel %vm167, %v181, 0.0
      %186 = vadd.xlane.f32.xlu0 %v185
      %v187 = vpop.xlane.xlu0 %186
      %v188 = vmax.f32 %v184, 1e-24
      %v189 = vmax.f32 %v187, 1e-24
      %v190 = vrsqrt.pop %v188
      %v191 = vrsqrt.pop %v189
      %v192 = vmul.f32 %v163, %v190
      %v193 = vmul.f32 %v164, %v191
      %v194 = vpack.c.bf16 %v193, %v192
      %v195 = vpack.c.bf16 %v179, %v178
      %v197 = vsel %vm167, %v194, 0
      %v200 = vsel %vm167, %v195, 0
      %202 = vmatprep.subr.bf16.mxu0 0
      %203 = vmatpush1.bf16.xpose.msra.mxu0 %v200
      %204 = vmatprep.subr.bf16.mxu0 0
      %205 = vmatpush1.bf16.xpose.msra.mxu0 0
      %206 = vmatprep.subr.bf16.mxu0 0
      %207 = vmatpush1.bf16.xpose.msra.mxu0 0
      %208 = vmatprep.subr.bf16.mxu0 0
      %209 = vmatpush1.bf16.xpose.msra.mxu0 0
      %210 = vmatprep.subr.bf16.mxu0 0
      %211 = vmatpush1.bf16.xpose.msra.mxu0 0
      %212 = vmatprep.subr.bf16.mxu0 0
      %213 = vmatpush1.bf16.xpose.msra.mxu0 0
      %214 = vmatprep.subr.bf16.mxu0 0
      %215 = vmatpush1.bf16.xpose.msra.mxu0 0
      %216 = vmatprep.subr.bf16.mxu0 0
      %217 = vmatpush1.bf16.xpose.msra.mxu0 0
      %218 = vmatprep.subr.bf16.mxu0 0
      %219 = vmatpush1.bf16.xpose.msra.mxu0 0
      %220 = vmatprep.subr.bf16.mxu0 0
      %221 = vmatpush1.bf16.xpose.msra.mxu0 0
      %222 = vmatprep.subr.bf16.mxu0 0
      %223 = vmatpush1.bf16.xpose.msra.mxu0 0
      %224 = vmatprep.subr.bf16.mxu0 0
      %225 = vmatpush1.bf16.xpose.msra.mxu0 0
      %226 = vmatprep.subr.bf16.mxu0 0
      %227 = vmatpush1.bf16.xpose.msra.mxu0 0
      %228 = vmatprep.subr.bf16.mxu0 0
      %229 = vmatpush1.bf16.xpose.msra.mxu0 0
      %230 = vmatprep.subr.bf16.mxu0 0
      %231 = vmatpush1.bf16.xpose.msra.mxu0 0
      %232 = vmatprep.subr.bf16.mxu0 0
      %233 = vmatpush1.bf16.xpose.msra.mxu0 0
      %234 = vmatprep.mubr.bf16.mxu0 0
      %235 = vmatmul.mubr.bf16.gmra.mrb[0].mxu0 %v197
      %v236 = vpop.f32.mrb[0].mxu0
      %v237 = vadd.f32 0.0, %v236
      %v238 = vpop.f32.mrb[0].mxu0
      %v239 = vpop.f32.mrb[0].mxu0
      %v240 = vadd.f32 0.0, %v239
      %v241 = vpop.f32.mrb[0].mxu0
      %242 = vdwg.mxu0
      %vm243 = vcmask 130048
      %v244 = vsel %vm243, %v237, -inf
      %v245 = vsel %vm243, %v240, -inf
      %v246 = vmax.f32 %v244, %v245
      %v247 = vrot.slane %v246, 4
      %v248 = vmax.f32 %v246, %v247
      %v249 = vrot.slane %v248, 2
      %v250 = vmax.f32 %v248, %v249
      %v251 = vrot.slane %v250, 1
      %v252 = vmax.f32 %v250, %v251
      %v253 = vlaneseq
      %v254 = vshrl.u32 %v253, 7
      %v255 = vadd.s32 %v254, 8
      %v256 = vcvt.s32.f32 %v254
      %v257 = vcvt.s32.f32 %v255
      %vm258 = vcmp.ge.f32.partialorder %v237, %v252
      %vm259 = vcmp.ge.f32.partialorder %v240, %v252
      %v260 = vsel %vm258, %v256, 16.0
      %v261 = vsel %vm259, %v257, 16.0
      %v262 = vsel %vm243, %v260, inf
      %v263 = vsel %vm243, %v261, inf
      %v264 = vmin.f32 %v262, %v263
      %v265 = vrot.slane %v264, 4
      %v266 = vmin.f32 %v264, %v265
      %v267 = vrot.slane %v266, 2
      %v268 = vmin.f32 %v266, %v267
      %v269 = vrot.slane %v268, 1
      %v270 = vmin.f32 %v268, %v269
      %v271 = vcvt.f32.s32.to.zero.pseudo %v270
      %vm272 = vcmask 122880
      %273 = vst.msk [vmem:[%s159] sm:$0x1] %vm272, %v271
      %p274 = scmp.lt.s32.totalorder %s13, 1
      %s275 = scalar_select %p274, %s13, 1
      %s276 = scalar_lea.vmem %s2, %s275
      // Predicated region
      $region29: #{plrc_forward.9} parent=27 // pred_check
        %p277 = pneg %p83
      $region30: #{plrc_forward.9} parent=27 // pred_check_branch
        %279 = sbr.rel (%p277) target = $region32
      $region31: #{plrc_forward.9} parent=27 // pred_region
        _
      $region32: #{plrc_forward.9} parent=27 // pred_fallthru
        _
    $region28: #{plrc_forward.9} parent=5 // pred_fallthru
      _
    %p280 = scmp.le.s32.totalorder 2, %s8
    // Predicated region
    $region33: #{plrc_forward.9} parent=5 // pred_check
      %p281 = pneg %p280
    $region34: #{plrc_forward.9} parent=5 // pred_check_branch
      %283 = sbr.rel (%p281) target = $region36
    $region35: #{plrc_forward.9} parent=5 // pred_region
      %s284 = ssub.s32 %s8, 2
      // Predicated region
      $region37: #{plrc_forward.9} parent=35 // pred_check
        %p285 = pneg %p89
      $region38: #{plrc_forward.9} parent=35 // pred_check_branch
        %287 = sbr.rel (%p285) target = $region40
      $region39: #{plrc_forward.9} parent=35 // pred_region
        %p288 = scmp.lt.s32.totalorder %s14, 1
        %s289 = scalar_select %p288, %s14, 1
        %s290 = scalar_lea.vmem %s2, %s289
      $region40: #{plrc_forward.9} parent=35 // pred_fallthru
        _
    $region36: #{plrc_forward.9} parent=5 // pred_fallthru
      _
  $region6: #{plrc_forward.9} parent=0 // loop_footer
    %s12 = sadd.s32 1, %s8
  $region7: #{plrc_forward.9} parent=0 // loop_footer_branch
    %7 = sbr.rel target = $region3
  $region8: #{plrc_forward.9} parent=0 // loop_exit
    _

// kernel: plrc_forward.8
$region0: #{plrc_forward.8}
  #allocation0 [shape = 'u32[]', space=smem, size = 0x4, offset = 0x4, fixed_abs, tag = 'smem constant byte address 0x4 - core index']
  #allocation1 [shape = 'u32[144,128]{1,0:T(1,128)}', space=vmem, size = 0x12000, scoped, tag = 'internal scratch']
  %s0 = inlined_call_operand.vmem [shape: bf16[32,16], index: 0, kind: input, shape index: {}]
  %s1 = inlined_call_operand.vmem [shape: bf16[64,256], index: 1, kind: input, shape index: {}]
  %s2 = inlined_call_operand.vmem [shape: bf16[2,16,64], index: 2, kind: input, shape index: {}]
  %s3 = inlined_call_operand.vmem [shape: bf16[2,128,64], index: 3, kind: input, shape index: {}]
  %s4 = inlined_call_operand.hbm [shape: f32[2,32,1], index: 4, kind: output, shape index: {0}]
  %s5 = inlined_call_operand.vmem [shape: f32[2,32,128], index: 5, kind: output, shape index: {1}]
  %s6 = inlined_call_operand.vmem [shape: f32[2,32,256], index: 6, kind: output, shape index: {2}]
  %7 = xla_tuple %s4, %s5, %s6
  %s8 = sld [smem:[#allocation0]]
  $region65: #{plrc_forward.8} parent=0
    _
  %s10 = ssub.s32 1, %s8
  %s11 = scalar_select 0, %s10, %s8
  $region1: #{plrc_forward.8} parent=0
    #allocation2 [shape = 'u8[32768]{0}', space=vmem, size = 0x8000, scoped, tag = 'output window, operand 0']
    #allocation3 [shape = 's32[2]{0}', space=sflag, size = 0x8, scoped, tag = 'scoped memory for plrc_forward.8']
    %12 = vsyncpa [#allocation3], 0
    %s13 = scalar_lea.sflag [#allocation3], 1
    %14 = vsyncpa %s13, 0
    loop: start=0, step=1, limit=4
    $region2: #{plrc_forward.8} parent=1 // loop_pre_header
      _
    $region3: #{plrc_forward.8} parent=1 // loop_header
      %s16 = sphi 0, %s20
      %p17 = scmp.ge.s32.totalorder %s16, 4
      %s24 = sphi 0, %s24
      %s26 = sphi 0, %s24
      %s27 = sphi 0, %s26
      %s41 = sphi 0, %s27
      %s45 = sphi 0, %s45
      %s47 = sphi 0, %s45
      %s48 = sphi 0, %s47
      %s62 = sphi 0, %s48
      %s68 = sphi 0, %s70
      %s71 = sphi 0, %s68
      %s72 = sphi 0, %s71
      %s88 = sphi 0, %s72
      %s94 = sphi 0, %s96
      %s97 = sphi 0, %s94
      %s98 = sphi 0, %s97
      %s114 = sphi 0, %s98
      %s120 = sphi 0, %s122
      %s123 = sphi 0, %s120
      %s124 = sphi 0, %s123
      %s140 = sphi 0, %s124
      %s146 = sphi 0, %s148
      %s149 = sphi 0, %s146
      %s150 = sphi 0, %s149
      %s166 = sphi 0, %s150
      %s172 = sphi 0, %s174
      %s175 = sphi 0, %s172
      %s176 = sphi 0, %s175
      %s192 = sphi 0, %s176
    $region4: #{plrc_forward.8} parent=1 // loop_header_branch
      %19 = sbr.rel (%p17) target = $region8
    $region5: #{plrc_forward.8} parent=1 // loop_body
      %s21 = ssub.s32 %s16, 1
      %s22 = ssub.s32 %s16, 2
      %s23 = sadd.s32 %s16, 1
      %s25 = sadd.s32 %s24, 1
      %p28 = scmp.eq.s32.totalorder %s16, 1
      %p29 = scmp.ne.s32.totalorder %s24, %s26
      %p30 = scmp.eq.s32.totalorder %s16, 0
      %p31 = por %p29, %p30
      %p32 = scmp.ne.s32.totalorder %s24, %s26
      %p33 = scmp.eq.s32.totalorder %s21, 1
      %p34 = por %p32, %p33
      %p35 = scmp.ne.s32.totalorder %s26, %s27
      %p36 = scmp.eq.s32.totalorder %s21, 0
      %p37 = por %p35, %p36
      %p38 = scmp.ne.s32.totalorder %s26, %s27
      %p39 = scmp.eq.s32.totalorder %s22, 1
      %p40 = por %p38, %p39
      %p42 = scmp.ne.s32.totalorder %s27, %s41
      %p43 = scmp.eq.s32.totalorder %s22, 0
      %p44 = por %p42, %p43
      %s46 = sadd.s32 %s45, 1
      %p49 = scmp.eq.s32.totalorder %s16, 1
      %p50 = scmp.ne.s32.totalorder %s45, %s47
      %p51 = scmp.eq.s32.totalorder %s16, 0
      %p52 = por %p50, %p51
      %p53 = scmp.ne.s32.totalorder %s45, %s47
      %p54 = scmp.eq.s32.totalorder %s21, 1
      %p55 = por %p53, %p54
      %p56 = scmp.ne.s32.totalorder %s47, %s48
      %p57 = scmp.eq.s32.totalorder %s21, 0
      %p58 = por %p56, %p57
      %p59 = scmp.ne.s32.totalorder %s47, %s48
      %p60 = scmp.eq.s32.totalorder %s22, 1
      %p61 = por %p59, %p60
      %p63 = scmp.ne.s32.totalorder %s48, %s62
      %p64 = scmp.eq.s32.totalorder %s22, 0
      %p65 = por %p63, %p64
      %s66 = ssub.s32 %s16, %s23
      %p67 = scmp.eq.s32.totalorder %s66, 0
      %s69 = sadd.s32 %s68, 1
      %s70 = scalar_select %p67, %s68, %s69
      %p73 = pneg %p67
      %p74 = scmp.eq.s32.totalorder %s16, 1
      %p75 = por %p73, %p74
      %p76 = scmp.ne.s32.totalorder %s68, %s71
      %p77 = scmp.eq.s32.totalorder %s16, 0
      %p78 = por %p76, %p77
      %p79 = scmp.ne.s32.totalorder %s68, %s71
      %p80 = scmp.eq.s32.totalorder %s21, 1
      %p81 = por %p79, %p80
      %p82 = scmp.ne.s32.totalorder %s71, %s72
      %p83 = scmp.eq.s32.totalorder %s21, 0
      %p84 = por %p82, %p83
      %p85 = scmp.ne.s32.totalorder %s71, %s72
      %p86 = scmp.eq.s32.totalorder %s22, 1
      %p87 = por %p85, %p86
      %p89 = scmp.ne.s32.totalorder %s72, %s88
      %p90 = scmp.eq.s32.totalorder %s22, 0
      %p91 = por %p89, %p90
      %s92 = ssub.s32 %s16, %s23
      %p93 = scmp.eq.s32.totalorder %s92, 0
      %s95 = sadd.s32 %s94, 1
      %s96 = scalar_select %p93, %s94, %s95
      %p99 = pneg %p93
      %p100 = scmp.eq.s32.totalorder %s16, 1
      %p101 = por %p99, %p100
      %p102 = scmp.ne.s32.totalorder %s94, %s97
      %p103 = scmp.eq.s32.totalorder %s16, 0
      %p104 = por %p102, %p103
      %p105 = scmp.ne.s32.totalorder %s94, %s97
      %p106 = scmp.eq.s32.totalorder %s21, 1
      %p107 = por %p105, %p106
      %p108 = scmp.ne.s32.totalorder %s97, %s98
      %p109 = scmp.eq.s32.totalorder %s21, 0
      %p110 = por %p108, %p109
      %p111 = scmp.ne.s32.totalorder %s97, %s98
      %p112 = scmp.eq.s32.totalorder %s22, 1
      %p113 = por %p111, %p112
      %p115 = scmp.ne.s32.totalorder %s98, %s114
      %p116 = scmp.eq.s32.totalorder %s22, 0
      %p117 = por %p115, %p116
      %s118 = ssub.s32 %s16, %s23
      %p119 = scmp.eq.s32.totalorder %s118, 0
      %s121 = sadd.s32 %s120, 1
      %s122 = scalar_select %p119, %s120, %s121
      %p125 = pneg %p119
      %p126 = scmp.eq.s32.totalorder %s16, 1
      %p127 = por %p125, %p126
      %p128 = scmp.ne.s32.totalorder %s120, %s123
      %p129 = scmp.eq.s32.totalorder %s16, 0
      %p130 = por %p128, %p129
      %p131 = scmp.ne.s32.totalorder %s120, %s123
      %p132 = scmp.eq.s32.totalorder %s21, 1
      %p133 = por %p131, %p132
      %p134 = scmp.ne.s32.totalorder %s123, %s124
      %p135 = scmp.eq.s32.totalorder %s21, 0
      %p136 = por %p134, %p135
      %p137 = scmp.ne.s32.totalorder %s123, %s124
      %p138 = scmp.eq.s32.totalorder %s22, 1
      %p139 = por %p137, %p138
      %p141 = scmp.ne.s32.totalorder %s124, %s140
      %p142 = scmp.eq.s32.totalorder %s22, 0
      %p143 = por %p141, %p142
      %s144 = ssub.s32 %s16, %s23
      %p145 = scmp.eq.s32.totalorder %s144, 0
      %s147 = sadd.s32 %s146, 1
      %s148 = scalar_select %p145, %s146, %s147
      %p151 = pneg %p145
      %p152 = scmp.eq.s32.totalorder %s16, 1
      %p153 = por %p151, %p152
      %p154 = scmp.ne.s32.totalorder %s146, %s149
      %p155 = scmp.eq.s32.totalorder %s16, 0
      %p156 = por %p154, %p155
      %p157 = scmp.ne.s32.totalorder %s146, %s149
      %p158 = scmp.eq.s32.totalorder %s21, 1
      %p159 = por %p157, %p158
      %p160 = scmp.ne.s32.totalorder %s149, %s150
      %p161 = scmp.eq.s32.totalorder %s21, 0
      %p162 = por %p160, %p161
      %p163 = scmp.ne.s32.totalorder %s149, %s150
      %p164 = scmp.eq.s32.totalorder %s22, 1
      %p165 = por %p163, %p164
      %p167 = scmp.ne.s32.totalorder %s150, %s166
      %p168 = scmp.eq.s32.totalorder %s22, 0
      %p169 = por %p167, %p168
      %s170 = ssub.s32 %s16, %s23
      %p171 = scmp.eq.s32.totalorder %s170, 0
      %s173 = sadd.s32 %s172, 1
      %s174 = scalar_select %p171, %s172, %s173
      %p177 = pneg %p171
      %p178 = scmp.eq.s32.totalorder %s16, 1
      %p179 = por %p177, %p178
      %p180 = scmp.ne.s32.totalorder %s172, %s175
      %p181 = scmp.eq.s32.totalorder %s16, 0
      %p182 = por %p180, %p181
      %p183 = scmp.ne.s32.totalorder %s172, %s175
      %p184 = scmp.eq.s32.totalorder %s21, 1
      %p185 = por %p183, %p184
      %p186 = scmp.ne.s32.totalorder %s175, %s176
      %p187 = scmp.eq.s32.totalorder %s21, 0
      %p188 = por %p186, %p187
      %p189 = scmp.ne.s32.totalorder %s175, %s176
      %p190 = scmp.eq.s32.totalorder %s22, 1
      %p191 = por %p189, %p190
      %p193 = scmp.ne.s32.totalorder %s176, %s192
      %p194 = scmp.eq.s32.totalorder %s22, 0
      %p195 = por %p193, %p194
      %p196 = scmp.le.s32.totalorder 1, %s16
      %p197 = scmp.lt.s32.totalorder %s16, 3
      %p198 = pnand %p196, %p197
      %p199 = pneg %p198
      // Predicated region
      $region9: #{plrc_forward.8} parent=5 // pred_check
        _
      $region10: #{plrc_forward.8} parent=5 // pred_check_branch
        %201 = sbr.rel (%p198) target = $region12
      $region11: #{plrc_forward.8} parent=5 // pred_region
        %s202 = ssub.s32 %s16, 1
        // Predicated region
        $region13: #{plrc_forward.8} parent=11 // pred_check
          %p203 = pneg %p37
        $region14: #{plrc_forward.8} parent=11 // pred_check_branch
          %205 = sbr.rel (%p203) target = $region16
        $region15: #{plrc_forward.8} parent=11 // pred_region
          _
        $region16: #{plrc_forward.8} parent=11 // pred_fallthru
          _
        // Predicated region
        $region17: #{plrc_forward.8} parent=11 // pred_check
          %p206 = pneg %p58
        $region18: #{plrc_forward.8} parent=11 // pred_check_branch
          %208 = sbr.rel (%p206) target = $region20
        $region19: #{plrc_forward.8} parent=11 // pred_region
          _
        $region20: #{plrc_forward.8} parent=11 // pred_fallthru
          _
      $region12: #{plrc_forward.8} parent=5 // pred_fallthru
        _
      %p209 = scmp.lt.s32.totalorder %s16, 2
      // Predicated region
      $region21: #{plrc_forward.8} parent=5 // pred_check
        %p210 = pneg %p209
      $region22: #{plrc_forward.8} parent=5 // pred_check_branch
        %212 = sbr.rel (%p210) target = $region24
      $region23: #{plrc_forward.8} parent=5 // pred_region
        // Predicated region
        $region25: #{plrc_forward.8} parent=23 // pred_check
          %p213 = pneg %p78
        $region26: #{plrc_forward.8} parent=23 // pred_check_branch
          %215 = sbr.rel (%p213) target = $region28
        $region27: #{plrc_forward.8} parent=23 // pred_region
          %p216 = scmp.lt.s32.totalorder %s16, 1
          %s217 = scalar_select %p216, %s16, 1
          %s218 = smul.addr %s217, 2
          %s219 = smul.addr %s218, 4
          %s220 = scalar_lea.vmem %s2, %s219
        $region28: #{plrc_forward.8} parent=23 // pred_fallthru
          _
        // Predicated region
        $region29: #{plrc_forward.8} parent=23 // pred_check
          %p221 = pneg %p104
        $region30: #{plrc_forward.8} parent=23 // pred_check_branch
          %223 = sbr.rel (%p221) target = $region32
        $region31: #{plrc_forward.8} parent=23 // pred_region
          %p224 = scmp.lt.s32.totalorder %s16, 1
          %s225 = scalar_select %p224, %s16, 1
          %s226 = smul.addr %s225, 16
          %s227 = smul.addr %s226, 4
          %s228 = scalar_lea.vmem %s3, %s227
        $region32: #{plrc_forward.8} parent=23 // pred_fallthru
          _
      $region24: #{plrc_forward.8} parent=5 // pred_fallthru
        _
      %p229 = scmp.le.s32.totalorder 1, %s16
      %p230 = scmp.lt.s32.totalorder %s16, 3
      %p231 = pnand %p229, %p230
      %p232 = pneg %p231
      // Predicated region
      $region33: #{plrc_forward.8} parent=5 // pred_check
        _
      $region34: #{plrc_forward.8} parent=5 // pred_check_branch
        %234 = sbr.rel (%p231) target = $region36
      $region35: #{plrc_forward.8} parent=5 // pred_region
        %s235 = ssub.s32 %s16, 1
        %p236 = pneg %p37
        %p237 = pneg %p34
        %p238 = pneg %p58
        %p239 = pneg %p55
        %p240 = scmp.lt.s32.totalorder %s21, 1
        %s241 = scalar_select %p240, %s21, 1
        %s242 = smul.addr %s241, 2
        %s243 = smul.addr %s242, 4
        %s244 = scalar_lea.vmem %s2, %s243
        %p245 = pneg %p84
        %p246 = pneg %p81
        %p247 = scmp.lt.s32.totalorder %s21, 1
        %s248 = scalar_select %p247, %s21, 1
        %s249 = smul.addr %s248, 16
        %s250 = smul.addr %s249, 4
        %s251 = scalar_lea.vmem %s3, %s250
        %p252 = pneg %p110
        %p253 = pneg %p107
        %p254 = pneg %p136
        %p255 = pneg %p133
        %s256 = sand.u32 %s123, 1
        %s257 = scalar_lea.sflag [#allocation3], %s256
        %s258 = sand.u32 %s123, 1
        %s259 = smul.addr %s258, 32
        %s260 = scalar_lea.vmem [#allocation2], %s259
        %p261 = pneg %p162
        %p262 = pneg %p159
        %p263 = scmp.lt.s32.totalorder %s21, 1
        %s264 = scalar_select %p263, %s21, 1
        %s265 = smul.addr %s264, 4
        %s266 = smul.addr %s265, 8
        %s267 = scalar_lea.vmem %s5, %s266
        %p268 = pneg %p188
        %p269 = pneg %p185
        %p270 = scmp.lt.s32.totalorder %s21, 1
        %s271 = scalar_select %p270, %s21, 1
        %s272 = smul.addr %s271, 8
        %s273 = smul.addr %s272, 8
        %s274 = scalar_lea.vmem %s6, %s273
        %p275 = scmp.lt.s32.totalorder %s21, 1
        %s276 = scalar_select %p275, %s21, 1
        %s277 = smul.addr %s276, 2
        %s278 = smul.addr %s277, 4
        %s279 = scalar_lea.vmem %s2, %s278
        %p280 = scmp.lt.s32.totalorder %s21, 1
        %s281 = scalar_select %p280, %s21, 1
        %s282 = smul.addr %s281, 16
        %s283 = smul.addr %s282, 4
        %s284 = scalar_lea.vmem %s3, %s283
        %p285 = scmp.lt.s32.totalorder %s21, 1
        %s286 = scalar_select %p285, %s21, 1
        %s287 = smul.addr %s286, 4
        %s288 = smul.addr %s287, 8
        %s289 = scalar_lea.vmem %s5, %s288
        %p290 = scmp.lt.s32.totalorder %s21, 1
        %s291 = scalar_select %p290, %s21, 1
        %s292 = smul.addr %s291, 8
        %s293 = smul.addr %s292, 8
        %s294 = scalar_lea.vmem %s6, %s293
        %v296 = vld [vmem:[%s0] sm:$0xf]
        %v297 = vld [vmem:[%s0 + $0x4] sm:$0xf]
        %v298 = vld [vmem:[%s0 + $0x8] sm:$0xf]
        %v299 = vld [vmem:[%s0 + $0xc] sm:$0xf]
        %v300 = vld [vmem:[%s279] sm:$0xf]
        %v301 = vld [vmem:[%s279 + $0x4] sm:$0xf]
        %v306 = vunpack.c.l.b16 %v296
        %v307 = vunpack.c.l.b16 %v297
        %v308 = vunpack.c.l.b16 %v298
        %v309 = vunpack.c.l.b16 %v299
        %v310 = vpack.c.b16 %v307, %v306
        %v311 = vpack.c.b16 %v309, %v308
        %v314 = vunpack.c.l.b16 %v300
        %v315 = vunpack.c.l.b16 %v301
        %v316 = vpack.c.b16 %v315, %v314
        %vm318 = vcmask 130048
        %v320 = vsel %vm318, %v310, 0
        %v323 = vsel %vm318, %v311, 0
        %325 = vmatprep.subr.bf16.mxu0 0
        %326 = vmatpush1.bf16.msra.mxu0 %v316
        %327 = vmatprep.subr.bf16.mxu0 0
        %328 = vmatpush1.bf16.msra.mxu0 0
        %329 = vmatprep.subr.bf16.mxu0 0
        %330 = vmatpush1.bf16.msra.mxu0 0
        %331 = vmatprep.subr.bf16.mxu0 0
        %332 = vmatpush1.bf16.msra.mxu0 0
        %333 = vmatprep.subr.bf16.mxu0 0
        %334 = vmatpush1.bf16.msra.mxu0 0
        %335 = vmatprep.subr.bf16.mxu0 0
        %336 = vmatpush1.bf16.msra.mxu0 0
        %337 = vmatprep.subr.bf16.mxu0 0
        %338 = vmatpush1.bf16.msra.mxu0 0
        %339 = vmatprep.subr.bf16.mxu0 0
        %340 = vmatpush1.bf16.msra.mxu0 0
        %341 = vmatprep.subr.bf16.mxu0 0
        %342 = vmatpush1.bf16.msra.mxu0 0
        %343 = vmatprep.subr.bf16.mxu0 0
        %344 = vmatpush1.bf16.msra.mxu0 0
        %345 = vmatprep.subr.bf16.mxu0 0
        %346 = vmatpush1.bf16.msra.mxu0 0
        %347 = vmatprep.subr.bf16.mxu0 0
        %348 = vmatpush1.bf16.msra.mxu0 0
        %349 = vmatprep.subr.bf16.mxu0 0
        %350 = vmatpush1.bf16.msra.mxu0 0
        %351 = vmatprep.subr.bf16.mxu0 0
        %352 = vmatpush1.bf16.msra.mxu0 0
        %353 = vmatprep.subr.bf16.mxu0 0
        %354 = vmatpush1.bf16.msra.mxu0 0
        %355 = vmatprep.subr.bf16.mxu0 0
        %356 = vmatpush1.bf16.msra.mxu0 0
        %357 = vmatprep.mubr.bf16.mxu0 0
        %358 = vmatmul.mubr.bf16.gmra.mrb[0].mxu0 %v320
        %v359 = vpop.f32.mrb[0].mxu0
        %v360 = vadd.f32 0.0, %v359
        %v361 = vpop.f32.mrb[0].mxu0
        %v362 = vpop.f32.mrb[0].mxu0
        %v363 = vadd.f32 0.0, %v362
        %v364 = vpop.f32.mrb[0].mxu0
        %365 = vmatprep.mubr.bf16.mxu0 0
        %366 = vmatmul.mubr.bf16.gmra.mrb[0].mxu0 %v323
        %v367 = vpop.f32.mrb[0].mxu0
        %v368 = vadd.f32 0.0, %v367
        %v369 = vpop.f32.mrb[0].mxu0
        %v370 = vpop.f32.mrb[0].mxu0
        %v371 = vadd.f32 0.0, %v370
        %v372 = vpop.f32.mrb[0].mxu0
        %373 = vdwg.mxu0
        %vm374 = vcmask 523264
        %v375 = vsel %vm374, %v360, 0.0
        %376 = vadd.xlane.f32.xlu0 %v375
        %v377 = vpop.xlane.xlu0 %376
        %v378 = vsel %vm374, %v363, 0.0
        %379 = vadd.xlane.f32.xlu0 %v378
        %v380 = vpop.xlane.xlu0 %379
        %v381 = vsel %vm374, %v368, 0.0
        %382 = vadd.xlane.f32.xlu0 %v381
        %v383 = vpop.xlane.xlu0 %382
        %v384 = vsel %vm374, %v371, 0.0
        %385 = vadd.xlane.f32.xlu0 %v384
        %v386 = vpop.xlane.xlu0 %385
        %v387 = vrcp.pop 64.0
        %v388 = vmul.f32 %v377, %v387
        %v389 = vmul.f32 %v380, %v387
        %v390 = vmul.f32 %v383, %v387
        %v391 = vmul.f32 %v386, %v387
        %vm392 = vcmask 7168
        %393 = vst.msk [vmem:[%s260] sm:$0xff] %vm392, %v388
        %394 = vst.msk [vmem:[%s260 + $0x8] sm:$0xff] %vm392, %v389
        %395 = vst.msk [vmem:[%s260 + $0x10] sm:$0xff] %vm392, %v390
        %396 = vst.msk [vmem:[%s260 + $0x18] sm:$0xff] %vm392, %v391
        %v397 = vpack.c.bf16 %v363, %v360
        %v398 = vpack.c.bf16 %v371, %v368
        %v399 = vld [vmem:[%s284] sm:$0xf]
        %v400 = vld [vmem:[%s284 + $0x4] sm:$0xf]
        %v401 = vld [vmem:[%s284 + $0x8] sm:$0xf]
        %v402 = vld [vmem:[%s284 + $0xc] sm:$0xf]
        %v403 = vld [vmem:[%s284 + $0x10] sm:$0xf]
        %v404 = vld [vmem:[%s284 + $0x14] sm:$0xf]
        %v405 = vld [vmem:[%s284 + $0x18] sm:$0xf]
        %v406 = vld [vmem:[%s284 + $0x1c] sm:$0xf]
        %v407 = vld [vmem:[%s284 + $0x20] sm:$0xf]
        %v408 = vld [vmem:[%s284 + $0x24] sm:$0xf]
        %v409 = vld [vmem:[%s284 + $0x28] sm:$0xf]
        %v410 = vld [vmem:[%s284 + $0x2c] sm:$0xf]
        %v411 = vld [vmem:[%s284 + $0x30] sm:$0xf]
        %v412 = vld [vmem:[%s284 + $0x34] sm:$0xf]
        %v413 = vld [vmem:[%s284 + $0x38] sm:$0xf]
        %v414 = vld [vmem:[%s284 + $0x3c] sm:$0xf]
        %v431 = vunpack.c.l.b16 %v399
        %v432 = vunpack.c.l.b16 %v400
        %v433 = vunpack.c.l.b16 %v401
        %v434 = vunpack.c.l.b16 %v402
        %v435 = vunpack.c.l.b16 %v403
        %v436 = vunpack.c.l.b16 %v404
        %v437 = vunpack.c.l.b16 %v405
        %v438 = vunpack.c.l.b16 %v406
        %v439 = vunpack.c.l.b16 %v407
        %v440 = vunpack.c.l.b16 %v408
        %v441 = vunpack.c.l.b16 %v409
        %v442 = vunpack.c.l.b16 %v410
        %v443 = vunpack.c.l.b16 %v411
        %v444 = vunpack.c.l.b16 %v412
        %v445 = vunpack.c.l.b16 %v413
        %v446 = vunpack.c.l.b16 %v414
        %v447 = vpack.c.b16 %v432, %v431
        %v448 = vpack.c.b16 %v434, %v433
        %v449 = vpack.c.b16 %v436, %v435
        %v450 = vpack.c.b16 %v438, %v437
        %v451 = vpack.c.b16 %v440, %v439
        %v452 = vpack.c.b16 %v442, %v441
        %v453 = vpack.c.b16 %v444, %v443
        %v454 = vpack.c.b16 %v446, %v445
        %v456 = vsel %vm374, %v397, 0
        %v459 = vsel %vm374, %v398, 0
        %v462 = vsel %vm374, %v447, 0
        %v465 = vsel %vm374, %v448, 0
        %v468 = vsel %vm374, %v449, 0
        %v471 = vsel %vm374, %v450, 0
        %v474 = vsel %vm374, %v451, 0
        %v477 = vsel %vm374, %v452, 0
        %v480 = vsel %vm374, %v453, 0
        %v483 = vsel %vm374, %v454, 0
        %485 = vmatprep.subr.bf16.mxu0 0
        %486 = vmatpush1.bf16.xpose.msra.mxu0 %v462
        %487 = vmatprep.subr.bf16.mxu0 0
        %488 = vmatpush1.bf16.xpose.msra.mxu0 %v465
        %489 = vmatprep.subr.bf16.mxu0 0
        %490 = vmatpush1.bf16.xpose.msra.mxu0 %v468
        %491 = vmatprep.subr.bf16.mxu0 0
        %492 = vmatpush1.bf16.xpose.msra.mxu0 %v471
        %493 = vmatprep.subr.bf16.mxu0 0
        %494 = vmatpush1.bf16.xpose.msra.mxu0 %v474
        %495 = vmatprep.subr.bf16.mxu0 0
        %496 = vmatpush1.bf16.xpose.msra.mxu0 %v477
        %497 = vmatprep.subr.bf16.mxu0 0
        %498 = vmatpush1.bf16.xpose.msra.mxu0 %v480
        %499 = vmatprep.subr.bf16.mxu0 0
        %500 = vmatpush1.bf16.xpose.msra.mxu0 %v483
        %501 = vmatprep.subr.bf16.mxu0 0
        %502 = vmatpush1.bf16.xpose.msra.mxu0 0
        %503 = vmatprep.subr.bf16.mxu0 0
        %504 = vmatpush1.bf16.xpose.msra.mxu0 0
        %505 = vmatprep.subr.bf16.mxu0 0
        %506 = vmatpush1.bf16.xpose.msra.mxu0 0
        %507 = vmatprep.subr.bf16.mxu0 0
        %508 = vmatpush1.bf16.xpose.msra.mxu0 0
        %509 = vmatprep.subr.bf16.mxu0 0
        %510 = vmatpush1.bf16.xpose.msra.mxu0 0
        %511 = vmatprep.subr.bf16.mxu0 0
        %512 = vmatpush1.bf16.xpose.msra.mxu0 0
        %513 = vmatprep.subr.bf16.mxu0 0
        %514 = vmatpush1.bf16.xpose.msra.mxu0 0
        %515 = vmatprep.subr.bf16.mxu0 0
        %516 = vmatpush1.bf16.xpose.msra.mxu0 0
        %517 = vmatprep.mubr.bf16.mxu0 0
        %518 = vmatmul.mubr.bf16.gmra.mrb[0].mxu0 %v456
        %v519 = vpop.f32.mrb[0].mxu0
        %v520 = vadd.f32 0.0, %v519
        %v521 = vpop.f32.mrb[0].mxu0
        %v522 = vpop.f32.mrb[0].mxu0
        %v523 = vadd.f32 0.0, %v522
        %v524 = vpop.f32.mrb[0].mxu0
        %525 = vmatprep.mubr.bf16.mxu0 0
        %526 = vmatmul.mubr.bf16.gmra.mrb[0].mxu0 %v459
        %v527 = vpop.f32.mrb[0].mxu0
        %v528 = vadd.f32 0.0, %v527
        %v529 = vpop.f32.mrb[0].mxu0
        %v530 = vpop.f32.mrb[0].mxu0
        %v531 = vadd.f32 0.0, %v530
        %v532 = vpop.f32.mrb[0].mxu0
        %533 = vdwg.mxu0
        %534 = vst [vmem:[%s289] sm:$0xff] %v520
        %535 = vst [vmem:[%s289 + $0x8] sm:$0xff] %v523
        %536 = vst [vmem:[%s289 + $0x10] sm:$0xff] %v528
        %537 = vst [vmem:[%s289 + $0x18] sm:$0xff] %v531
        %v538 = vld [vmem:[%s1] sm:$0xff]
        %v539 = vld [vmem:[%s1 + $0x8] sm:$0xff]
        %v540 = vld [vmem:[%s1 + $0x10] sm:$0xff]
        %v541 = vld [vmem:[%s1 + $0x18] sm:$0xff]
        %v542 = vld [vmem:[%s1 + $0x20] sm:$0xff]
        %v543 = vld [vmem:[%s1 + $0x28] sm:$0xff]
        %v544 = vld [vmem:[%s1 + $0x30] sm:$0xff]
        %v545 = vld [vmem:[%s1 + $0x38] sm:$0xff]
        %v554 = vunpack.c.l.b16 %v538
        %v555 = vunpack.c.h.b16 %v538
        %v556 = vunpack.c.l.b16 %v539
        %v557 = vunpack.c.h.b16 %v539
        %v558 = vunpack.c.l.b16 %v540
        %v559 = vunpack.c.h.b16 %v540
        %v560 = vunpack.c.l.b16 %v541
        %v561 = vunpack.c.h.b16 %v541
        %v562 = vunpack.c.l.b16 %v542
        %v563 = vunpack.c.h.b16 %v542
        %v564 = vunpack.c.l.b16 %v543
        %v565 = vunpack.c.h.b16 %v543
        %v566 = vunpack.c.l.b16 %v544
        %v567 = vunpack.c.h.b16 %v544
        %v568 = vunpack.c.l.b16 %v545
        %v569 = vunpack.c.h.b16 %v545
        %v570 = vpack.c.b16 %v556, %v554
        %v571 = vpack.c.b16 %v557, %v555
        %v572 = vpack.c.b16 %v560, %v558
        %v573 = vpack.c.b16 %v561, %v559
        %v574 = vpack.c.b16 %v564, %v562
        %v575 = vpack.c.b16 %v565, %v563
        %v576 = vpack.c.b16 %v568, %v566
        %v577 = vpack.c.b16 %v569, %v567
        %586 = vmatprep.subr.bf16.mxu0 %v571
        %587 = vmatpush1.bf16.msra.mxu0 %v570
        %588 = vmatprep.subr.bf16.mxu0 %v573
        %589 = vmatpush1.bf16.msra.mxu0 %v572
        %590 = vmatprep.subr.bf16.mxu0 %v575
        %591 = vmatpush1.bf16.msra.mxu0 %v574
        %592 = vmatprep.subr.bf16.mxu0 %v577
        %593 = vmatpush1.bf16.msra.mxu0 %v576
        %594 = vmatprep.subr.bf16.mxu0 0
        %595 = vmatpush1.bf16.msra.mxu0 0
        %596 = vmatprep.subr.bf16.mxu0 0
        %597 = vmatpush1.bf16.msra.mxu0 0
        %598 = vmatprep.subr.bf16.mxu0 0
        %599 = vmatpush1.bf16.msra.mxu0 0
        %600 = vmatprep.subr.bf16.mxu0 0
        %601 = vmatpush1.bf16.msra.mxu0 0
        %602 = vmatprep.subr.bf16.mxu0 0
        %603 = vmatpush1.bf16.msra.mxu0 0
        %604 = vmatprep.subr.bf16.mxu0 0
        %605 = vmatpush1.bf16.msra.mxu0 0
        %606 = vmatprep.subr.bf16.mxu0 0
        %607 = vmatpush1.bf16.msra.mxu0 0
        %608 = vmatprep.subr.bf16.mxu0 0
        %609 = vmatpush1.bf16.msra.mxu0 0
        %610 = vmatprep.subr.bf16.mxu0 0
        %611 = vmatpush1.bf16.msra.mxu0 0
        %612 = vmatprep.subr.bf16.mxu0 0
        %613 = vmatpush1.bf16.msra.mxu0 0
        %614 = vmatprep.subr.bf16.mxu0 0
        %615 = vmatpush1.bf16.msra.mxu0 0
        %616 = vmatprep.subr.bf16.mxu0 0
        %617 = vmatpush1.bf16.msra.mxu0 0
        %618 = vmatprep.mubr.bf16.mxu0 0
        %619 = vmatmul.mubr.bf16.gmra.mrb[0].mxu0 %v456
        %v620 = vpop.f32.mrb[0].mxu0
        %v621 = vadd.f32 0.0, %v620
        %v622 = vpop.f32.mrb[0].mxu0
        %v623 = vadd.f32 0.0, %v622
        %v624 = vpop.f32.mrb[0].mxu0
        %v625 = vadd.f32 0.0, %v624
        %v626 = vpop.f32.mrb[0].mxu0
        %v627 = vadd.f32 0.0, %v626
        %628 = vmatprep.mubr.bf16.mxu0 0
        %629 = vmatmul.mubr.bf16.gmra.mrb[0].mxu0 %v459
        %v630 = vpop.f32.mrb[0].mxu0
        %v631 = vadd.f32 0.0, %v630
        %v632 = vpop.f32.mrb[0].mxu0
        %v633 = vadd.f32 0.0, %v632
        %v634 = vpop.f32.mrb[0].mxu0
        %v635 = vadd.f32 0.0, %v634
        %v636 = vpop.f32.mrb[0].mxu0
        %v637 = vadd.f32 0.0, %v636
        %638 = vdwg.mxu0
        %639 = vst [vmem:[%s294] sm:$0xff] %v621
        %640 = vst [vmem:[%s294 + $0x8] sm:$0xff] %v623
        %641 = vst [vmem:[%s294 + $0x10] sm:$0xff] %v625
        %642 = vst [vmem:[%s294 + $0x18] sm:$0xff] %v627
        %643 = vst [vmem:[%s294 + $0x20] sm:$0xff] %v631
        %644 = vst [vmem:[%s294 + $0x28] sm:$0xff] %v633
        %645 = vst [vmem:[%s294 + $0x30] sm:$0xff] %v635
        %646 = vst [vmem:[%s294 + $0x38] sm:$0xff] %v637
        %s647 = sand.u32 %s123, 1
        %s648 = scalar_lea.sflag [#allocation3], %s647
        %s649 = sand.u32 %s123, 1
        %s650 = smul.addr %s649, 32
        %s651 = scalar_lea.vmem [#allocation2], %s650
        %p652 = scmp.lt.s32.totalorder %s21, 1
        %s653 = scalar_select %p652, %s21, 1
        %s654 = smul.addr %s653, 4
        %s655 = smul.addr %s654, 8
        %s656 = scalar_lea.vmem %s5, %s655
        %p657 = scmp.lt.s32.totalorder %s21, 1
        %s658 = scalar_select %p657, %s21, 1
        %s659 = smul.addr %s658, 8
        %s660 = smul.addr %s659, 8
        %s661 = scalar_lea.vmem %s6, %s660
        // Predicated region
        $region37: #{plrc_forward.8} parent=35 // pred_check
          %p662 = pneg %p133
        $region38: #{plrc_forward.8} parent=35 // pred_check_branch
          %664 = sbr.rel (%p662) target = $region40
        $region39: #{plrc_forward.8} parent=35 // pred_region
          %s666 = ssub.s32 512, 512
          %667 = vsyncadd %s648, %s666
          %s668 = smul.addr %s21, 4
          %s669 = smul.addr %s668, 128
          %s670 = scalar_lea.hbm %s4, %s669
          %s671 = sshll.u32 %s651, 4
          %s672 = int_to_ptr.vmem [resolvable:$true] %s671
          %677 = dma.vmem_to_hbm [thread:$0]  %s672, 512, %s670, %s648, 128, 128, 8
        $region40: #{plrc_forward.8} parent=35 // pred_fallthru
          _
        // Predicated region
        $region41: #{plrc_forward.8} parent=35 // pred_check
          %p678 = pneg %p159
        $region42: #{plrc_forward.8} parent=35 // pred_check_branch
          %680 = sbr.rel (%p678) target = $region44
        $region43: #{plrc_forward.8} parent=35 // pred_region
          _
        $region44: #{plrc_forward.8} parent=35 // pred_fallthru
          _
        // Predicated region
        $region45: #{plrc_forward.8} parent=35 // pred_check
          %p681 = pneg %p185
        $region46: #{plrc_forward.8} parent=35 // pred_check_branch
          %683 = sbr.rel (%p681) target = $region48
        $region47: #{plrc_forward.8} parent=35 // pred_region
          _
        $region48: #{plrc_forward.8} parent=35 // pred_fallthru
          _
      $region36: #{plrc_forward.8} parent=5 // pred_fallthru
        _
      %p684 = scmp.le.s32.totalorder 2, %s16
      // Predicated region
      $region49: #{plrc_forward.8} parent=5 // pred_check
        %p685 = pneg %p684
      $region50: #{plrc_forward.8} parent=5 // pred_check_branch
        %687 = sbr.rel (%p685) target = $region52
      $region51: #{plrc_forward.8} parent=5 // pred_region
        %s688 = ssub.s32 %s16, 2
        // Predicated region
        $region53: #{plrc_forward.8} parent=51 // pred_check
          %p689 = pneg %p139
        $region54: #{plrc_forward.8} parent=51 // pred_check_branch
          %691 = sbr.rel (%p689) target = $region56
        $region55: #{plrc_forward.8} parent=51 // pred_region
          %s692 = sand.u32 %s124, 1
          %s693 = scalar_lea.sflag [#allocation3], %s692
          %s694 = sand.u32 %s124, 1
          %s695 = smul.addr %s694, 32
          %s696 = scalar_lea.vmem [#allocation2], %s695
          %697 = dma.done %s693, 512
        $region56: #{plrc_forward.8} parent=51 // pred_fallthru
          _
        // Predicated region
        $region57: #{plrc_forward.8} parent=51 // pred_check
          %p698 = pneg %p165
        $region58: #{plrc_forward.8} parent=51 // pred_check_branch
          %700 = sbr.rel (%p698) target = $region60
        $region59: #{plrc_forward.8} parent=51 // pred_region
          %p701 = scmp.lt.s32.totalorder %s22, 1
          %s702 = scalar_select %p701, %s22, 1
          %s703 = smul.addr %s702, 4
          %s704 = smul.addr %s703, 8
          %s705 = scalar_lea.vmem %s5, %s704
        $region60: #{plrc_forward.8} parent=51 // pred_fallthru
          _
        // Predicated region
        $region61: #{plrc_forward.8} parent=51 // pred_check
          %p706 = pneg %p191
        $region62: #{plrc_forward.8} parent=51 // pred_check_branch
          %708 = sbr.rel (%p706) target = $region64
        $region63: #{plrc_forward.8} parent=51 // pred_region
          %p709 = scmp.lt.s32.totalorder %s22, 1
          %s710 = scalar_select %p709, %s22, 1
          %s711 = smul.addr %s710, 8
          %s712 = smul.addr %s711, 8
          %s713 = scalar_lea.vmem %s6, %s712
        $region64: #{plrc_forward.8} parent=51 // pred_fallthru
          _
      $region52: #{plrc_forward.8} parent=5 // pred_fallthru
        _
    $region6: #{plrc_forward.8} parent=1 // loop_footer
      %s20 = sadd.s32 1, %s16
    $region7: #{plrc_forward.8} parent=1 // loop_footer_branch
      %15 = sbr.rel target = $region3
    $region8: #{plrc_forward.8} parent=1 // loop_exit
      _
    %714 = vsyncpa [#allocation3], 1
    %s715 = scalar_lea.sflag [#allocation3], 1
    %716 = vsyncpa %s715, 1

</llo_original>
